<compile_context>
chip_gen: v6e
topology: v6e:2x2x1
jax: 0.10.0
libtpu: 0.0.40
codegen_flags: <defaults>
</compile_context>

<pallas_src>
import jax
import jax.numpy as jnp
from jax.experimental import pallas as pl
from jax.experimental.pallas import tpu as pltpu

N_NODES = 16          # nodes per (small synthetic ZINC-like) graph
N_EDGES = 40          # edges per graph
N_GRAPHS = 8          # graphs in the batch
G_BLK = 4             # graphs processed per grid step
F_IN = 4              # stands in for train_dataset.num_node_features
REP_DIM = 128
H1 = REP_DIM // 2     # 64   (conv1 true output width)
H1P = 128             # conv1 output padded to a lane-dense 128
H2 = REP_DIM          # 128
H3 = REP_DIM * 2      # 256
BN_EPS = 1e-5
LEAKY_SLOPE = 0.02
BIAS_ROWS = 8         # packed-bias array padded to an (8, 256) f32 tile


def gcn_kernel(a_ref, x_ref, w1_ref, w2_ref, w3_ref, bias_ref,
               rep_ref, emb_ref):
    a = a_ref[...]                       # [G, N, N]  bf16 normalized adjacency
    bias = bias_ref[...]                 # [8, H3]    f32 packed per-layer biases
    g, n, _ = a.shape

    def aggregate(h):                    # [G, N, C] bf16 -> [G*N, C] bf16
        ah = jnp.einsum('gij,gjc->gic', a, h,
                        preferred_element_type=jnp.float32)
        return ah.reshape(g * n, h.shape[-1]).astype(jnp.bfloat16)

    def transform(ah2d, w_ref, brow, width):   # -> [G*N, width] f32
        y = jnp.dot(ah2d, w_ref[...], preferred_element_type=jnp.float32)
        return y + bias[brow:brow + 1, :width]

    # conv1 (+ folded bn1) -> LeakyReLU(0.02) -> dropout(identity, eval mode)
    h1 = transform(aggregate(x_ref[...]), w1_ref, 0, H1P)       # [G*N, 128] f32
    h1 = jnp.where(h1 >= 0, h1, LEAKY_SLOPE * h1).astype(jnp.bfloat16)

    # conv2 (+ folded bn2)  => x_rep
    x_rep = transform(aggregate(h1.reshape(g, n, H1P)), w2_ref, 1, H2)
    rep_ref[...] = x_rep                                         # [G*N, 128] f32

    # conv3 => x_emb   (bn3 / fc1 are never applied to the returned tensors)
    x_emb = transform(aggregate(x_rep.astype(jnp.bfloat16).reshape(g, n, H2)),
                      w3_ref, 2, H3)
    emb_ref[...] = x_emb                                         # [G*N, 256] f32


def build_normalized_adjacency(edge_index, n_nodes):
    """A_hat = D^-1/2 (A + I) D^-1/2, matching PyG gcn_norm with self-loops.

    Duplicate edges accumulate (scatter-add), as PyG does on a non-coalesced
    edge_index.
    """
    src, dst = edge_index[0], edge_index[1]
    a = jnp.zeros((n_nodes, n_nodes), jnp.float32).at[dst, src].add(1.0)
    a = a + jnp.eye(n_nodes, dtype=jnp.float32)
    deg = a.sum(axis=1)
    dinv = jnp.where(deg > 0, jax.lax.rsqrt(deg), 0.0)
    return dinv[:, None] * a * dinv[None, :]


def fold_params(params):
    """One-time prep: BN folding, H1 padding, bias packing, bf16 cast."""
    def fold(w, b, bn):
        scale = bn["gamma"] * jax.lax.rsqrt(bn["var"] + BN_EPS)      # (1, H)
        return w * scale, scale * (b - bn["mean"]) + bn["beta"]

    w1, b1 = fold(params["w1"], params["b1"], params["bn1"])
    w2, b2 = fold(params["w2"], params["b2"], params["bn2"])
    w3, b3 = params["w3"], params["b3"]

    # Zero-pad conv1's 64 output channels to 128 (and w2's input rows to match)
    # so every lane dimension in the kernel is a multiple of 128.
    w1p = jnp.zeros((F_IN, H1P), jnp.float32).at[:, :H1].set(w1)
    w2p = jnp.zeros((H1P, H2), jnp.float32).at[:H1, :].set(w2)

    bias = jnp.zeros((BIAS_ROWS, H3), jnp.float32)
    bias = bias.at[0, :H1].set(b1[0])
    bias = bias.at[1, :H2].set(b2[0])
    bias = bias.at[2, :H3].set(b3[0])

    return dict(w1=w1p.astype(jnp.bfloat16),
                w2=w2p.astype(jnp.bfloat16),
                w3=w3.astype(jnp.bfloat16),
                bias=bias)


def init_params(key):
    ks = jax.random.split(key, 3)

    def glorot(k, shape):
        lim = jnp.sqrt(6.0 / (shape[0] + shape[1]))
        return jax.random.uniform(k, shape, jnp.float32, -lim, lim)

    def bn(h):
        return dict(gamma=jnp.ones((1, h), jnp.float32),
                    beta=jnp.zeros((1, h), jnp.float32),
                    mean=jnp.zeros((1, h), jnp.float32),
                    var=jnp.ones((1, h), jnp.float32))

    # fc1 (256 -> 999) parameters intentionally omitted: its output is
    # discarded by the PyTorch forward, so that branch is dead code.
    return dict(
        w1=glorot(ks[0], (F_IN, H1)), b1=jnp.zeros((1, H1), jnp.float32), bn1=bn(H1),
        w2=glorot(ks[1], (H1, H2)), b2=jnp.zeros((1, H2), jnp.float32), bn2=bn(H2),
        w3=glorot(ks[2], (H2, H3)), b3=jnp.zeros((1, H3), jnp.float32),
    )


@jax.jit
def gcn_forward(a_hat, x, w1, w2, w3, bias):
    """Hot path: all inputs are pre-normalized / pre-folded / pre-cast."""
    b, n, _ = a_hat.shape
    assert b % G_BLK == 0
    grid = (b // G_BLK,)

    flops = 2 * b * n * (n * F_IN + F_IN * H1P + n * H1P + H1P * H2
                         + n * H2 + H2 * H3)
    bytes_accessed = (2 * (b * n * n + b * n * F_IN + F_IN * H1P
                           + H1P * H2 + H2 * H3)
                      + 4 * (BIAS_ROWS * H3 + b * n * H2 + b * n * H3))

    x_rep, x_emb = pl.pallas_call(
        gcn_kernel,
        grid=grid,
        in_specs=[
            pl.BlockSpec((G_BLK, n, n), lambda g: (g, 0, 0)),       # A_hat block
            pl.BlockSpec((G_BLK, n, F_IN), lambda g: (g, 0, 0)),    # node feats
            pl.BlockSpec((F_IN, H1P), lambda g: (0, 0)),            # w1 (invariant)
            pl.BlockSpec((H1P, H2), lambda g: (0, 0)),              # w2 (invariant)
            pl.BlockSpec((H2, H3), lambda g: (0, 0)),               # w3 (invariant)
            pl.BlockSpec((BIAS_ROWS, H3), lambda g: (0, 0)),        # packed biases
        ],
        out_specs=(
            pl.BlockSpec((G_BLK * n, H2), lambda g: (g, 0)),
            pl.BlockSpec((G_BLK * n, H3), lambda g: (g, 0)),
        ),
        out_shape=(jax.ShapeDtypeStruct((b * n, H2), jnp.float32),
                   jax.ShapeDtypeStruct((b * n, H3), jnp.float32)),
        cost_estimate=pl.CostEstimate(flops=flops, transcendentals=0,
                                      bytes_accessed=bytes_accessed),
        compiler_params=pltpu.CompilerParams(
            dimension_semantics=("parallel",)),
    )(a_hat, x, w1, w2, w3, bias)
    return x_rep, x_emb


def gcn_reference(x, a_hat, params):
    """Pure-JAX f32 reference mirroring the PyTorch forward (eval mode)."""
    def conv(h, w, b):
        hw = jnp.einsum('gnc,cd->gnd', h, w)
        return jnp.einsum('gij,gjd->gid', a_hat, hw) + b

    def bn(h, p):
        return (p["gamma"] * (h - p["mean"]) * jax.lax.rsqrt(p["var"] + BN_EPS)
                + p["beta"])

    h = bn(conv(x, params["w1"], params["b1"]), params["bn1"])
    h = jnp.where(h >= 0, h, LEAKY_SLOPE * h)
    x_rep = bn(conv(h, params["w2"], params["b2"]), params["bn2"])
    x_emb = conv(x_rep, params["w3"], params["b3"])
    return x_rep.reshape(-1, H2), x_emb.reshape(-1, H3)


if __name__ == "__main__":
    key = jax.random.PRNGKey(0)
    k_x, k_src, k_dst, k_p = jax.random.split(key, 4)

    # Synthetic batch of ZINC-like graphs: features [B, N, F_IN], edges [B, 2, E].
    x = jax.random.normal(k_x, (N_GRAPHS, N_NODES, F_IN), jnp.float32)
    src = jax.random.randint(k_src, (N_GRAPHS, N_EDGES), 0, N_NODES, jnp.int32)
    dst = jax.random.randint(k_dst, (N_GRAPHS, N_EDGES), 0, N_NODES, jnp.int32)
    edge_index = jnp.stack([src, dst], axis=1)                  # [B, 2, E]

    params = init_params(k_p)

    # One-time graph/parameter prep (hoisted out of the hot forward).
    a_hat = jax.vmap(lambda e: build_normalized_adjacency(e, N_NODES))(edge_index)
    folded = fold_params(params)
    a_hat_bf16 = a_hat.astype(jnp.bfloat16)
    x_bf16 = x.astype(jnp.bfloat16)

    x_rep, x_emb = gcn_forward(a_hat_bf16, x_bf16,
                               folded["w1"], folded["w2"], folded["w3"],
                               folded["bias"])
    jax.block_until_ready((x_rep, x_emb))

    ref_rep, ref_emb = gcn_reference(x, a_hat, params)
    assert x_rep.shape == (N_GRAPHS * N_NODES, H2) and x_rep.dtype == jnp.float32
    assert x_emb.shape == (N_GRAPHS * N_NODES, H3) and x_emb.dtype == jnp.float32
    assert bool(jnp.allclose(x_rep, ref_rep, rtol=2e-2, atol=2e-2))
    assert bool(jnp.allclose(x_emb, ref_emb, rtol=2e-2, atol=2e-2))
    print("KERNEL_OK")
</pallas_src>

<mosaic_0001>
module attributes {stable_mosaic.version = 11 : i64} {
  func.func @gcn_kernel(%arg0: i32, %arg1: memref<4x16x16xbf16, #tpu.memory_space<vmem>>, %arg2: memref<4x16x4xbf16, #tpu.memory_space<vmem>>, %arg3: memref<4x128xbf16, #tpu.memory_space<vmem>>, %arg4: memref<128x128xbf16, #tpu.memory_space<vmem>>, %arg5: memref<128x256xbf16, #tpu.memory_space<vmem>>, %arg6: memref<8x256xf32, #tpu.memory_space<vmem>>, %arg7: memref<64x128xf32, #tpu.memory_space<vmem>>, %arg8: memref<64x256xf32, #tpu.memory_space<vmem>>) attributes {dimension_semantics = [#tpu.dimension_semantics<parallel>], iteration_bounds = array<i64: 2>, scalar_prefetch = 0 : i64, scratch_operands = 0 : i64, tpu.core_type = #tpu.core_type<tc>, window_params = [{transform_indices = @transform_0, window_bounds = array<i64: 4, 16, 16>}, {transform_indices = @transform_1, window_bounds = array<i64: 4, 16, 4>}, {pipeline_mode = #tpu.pipeline_mode<synchronous>, transform_indices = @transform_2, window_bounds = array<i64: 4, 128>}, {pipeline_mode = #tpu.pipeline_mode<synchronous>, transform_indices = @transform_3, window_bounds = array<i64: 128, 128>}, {pipeline_mode = #tpu.pipeline_mode<synchronous>, transform_indices = @transform_4, window_bounds = array<i64: 128, 256>}, {pipeline_mode = #tpu.pipeline_mode<synchronous>, transform_indices = @transform_5, window_bounds = array<i64: 8, 256>}, {transform_indices = @transform_6, window_bounds = array<i64: 64, 128>}, {transform_indices = @transform_7, window_bounds = array<i64: 64, 256>}]} {
    %c0 = arith.constant 0 : index
    %c0_0 = arith.constant 0 : index
    %c0_1 = arith.constant 0 : index
    %0 = vector.load %arg1[%c0, %c0_0, %c0_1] : memref<4x16x16xbf16, #tpu.memory_space<vmem>>, vector<4x16x16xbf16>
    %c0_2 = arith.constant 0 : index
    %c0_3 = arith.constant 0 : index
    %1 = vector.load %arg6[%c0_2, %c0_3] : memref<8x256xf32, #tpu.memory_space<vmem>>, vector<8x256xf32>
    %c0_4 = arith.constant 0 : index
    %c0_5 = arith.constant 0 : index
    %c0_6 = arith.constant 0 : index
    %2 = vector.load %arg2[%c0_4, %c0_5, %c0_6] : memref<4x16x4xbf16, #tpu.memory_space<vmem>>, vector<4x16x4xbf16>
    "tpu.trace_start"() <{level = 10 : i32, message = "gij,gjc->gic"}> : () -> ()
    %cst = arith.constant dense<0.000000e+00> : vector<4x16x4xf32>
    %3 = tpu.matmul %0, %2, %cst {dimension_numbers = #tpu.dot_dimension_numbers<[2], [1], [1], [2], [0, 0, 0, 1, 1, 2], [0], [0]>} : vector<4x16x16xbf16>, vector<4x16x4xbf16>, vector<4x16x4xf32> -> vector<4x16x4xf32>
    "tpu.trace_stop"() : () -> ()
    %4 = vector.shape_cast %3 : vector<4x16x4xf32> to vector<64x4xf32>
    %5 = arith.truncf %4 : vector<64x4xf32> to vector<64x4xbf16>
    %c0_7 = arith.constant 0 : index
    %c0_8 = arith.constant 0 : index
    %6 = vector.load %arg3[%c0_7, %c0_8] : memref<4x128xbf16, #tpu.memory_space<vmem>>, vector<4x128xbf16>
    %cst_9 = arith.constant dense<0.000000e+00> : vector<64x128xf32>
    %7 = tpu.matmul %5, %6, %cst_9 {dimension_numbers = #tpu.dot_dimension_numbers<[1], [0], [0], [1], [0, 0, 1, 1], [], []>} : vector<64x4xbf16>, vector<4x128xbf16>, vector<64x128xf32> -> vector<64x128xf32>
    %8 = vector.extract_strided_slice %1 {offsets = [0, 0], sizes = [1, 128], strides = [1, 1]} : vector<8x256xf32> to vector<1x128xf32>
    %9 = vector.broadcast %8 : vector<1x128xf32> to vector<64x128xf32>
    %10 = arith.addf %7, %9 : vector<64x128xf32>
    %cst_10 = arith.constant 0.000000e+00 : f32
    %11 = vector.broadcast %cst_10 : f32 to vector<64x128xf32>
    %12 = arith.cmpf oge, %10, %11 : vector<64x128xf32>
    %cst_11 = arith.constant 2.000000e-02 : f32
    %13 = vector.broadcast %cst_11 : f32 to vector<64x128xf32>
    %14 = arith.mulf %13, %10 : vector<64x128xf32>
    %15 = arith.select %12, %10, %14 : vector<64x128xi1>, vector<64x128xf32>
    %16 = arith.truncf %15 : vector<64x128xf32> to vector<64x128xbf16>
    %17 = vector.shape_cast %16 : vector<64x128xbf16> to vector<4x16x128xbf16>
    "tpu.trace_start"() <{level = 10 : i32, message = "gij,gjc->gic"}> : () -> ()
    %cst_12 = arith.constant dense<0.000000e+00> : vector<4x16x128xf32>
    %18 = tpu.matmul %0, %17, %cst_12 {dimension_numbers = #tpu.dot_dimension_numbers<[2], [1], [1], [2], [0, 0, 0, 1, 1, 2], [0], [0]>} : vector<4x16x16xbf16>, vector<4x16x128xbf16>, vector<4x16x128xf32> -> vector<4x16x128xf32>
    "tpu.trace_stop"() : () -> ()
    %19 = vector.shape_cast %18 : vector<4x16x128xf32> to vector<64x128xf32>
    %20 = arith.truncf %19 : vector<64x128xf32> to vector<64x128xbf16>
    %c0_13 = arith.constant 0 : index
    %c0_14 = arith.constant 0 : index
    %21 = vector.load %arg4[%c0_13, %c0_14] : memref<128x128xbf16, #tpu.memory_space<vmem>>, vector<128x128xbf16>
    %cst_15 = arith.constant dense<0.000000e+00> : vector<64x128xf32>
    %22 = tpu.matmul %20, %21, %cst_15 {dimension_numbers = #tpu.dot_dimension_numbers<[1], [0], [0], [1], [0, 0, 1, 1], [], []>} : vector<64x128xbf16>, vector<128x128xbf16>, vector<64x128xf32> -> vector<64x128xf32>
    %23 = vector.extract_strided_slice %1 {offsets = [1, 0], sizes = [1, 128], strides = [1, 1]} : vector<8x256xf32> to vector<1x128xf32>
    %24 = vector.broadcast %23 : vector<1x128xf32> to vector<64x128xf32>
    %25 = arith.addf %22, %24 : vector<64x128xf32>
    %c0_16 = arith.constant 0 : index
    %c0_17 = arith.constant 0 : index
    %26 = vector.load %arg7[%c0_16, %c0_17] : memref<64x128xf32, #tpu.memory_space<vmem>>, vector<64x128xf32>
    tpu.vector_store %arg7[%c0_16, %c0_17], %25 {strides = array<i32>} : memref<64x128xf32, #tpu.memory_space<vmem>>, vector<64x128xf32>,
    %27 = arith.truncf %25 : vector<64x128xf32> to vector<64x128xbf16>
    %28 = vector.shape_cast %27 : vector<64x128xbf16> to vector<4x16x128xbf16>
    "tpu.trace_start"() <{level = 10 : i32, message = "gij,gjc->gic"}> : () -> ()
    %cst_18 = arith.constant dense<0.000000e+00> : vector<4x16x128xf32>
    %29 = tpu.matmul %0, %28, %cst_18 {dimension_numbers = #tpu.dot_dimension_numbers<[2], [1], [1], [2], [0, 0, 0, 1, 1, 2], [0], [0]>} : vector<4x16x16xbf16>, vector<4x16x128xbf16>, vector<4x16x128xf32> -> vector<4x16x128xf32>
    "tpu.trace_stop"() : () -> ()
    %30 = vector.shape_cast %29 : vector<4x16x128xf32> to vector<64x128xf32>
    %31 = arith.truncf %30 : vector<64x128xf32> to vector<64x128xbf16>
    %c0_19 = arith.constant 0 : index
    %c0_20 = arith.constant 0 : index
    %32 = vector.load %arg5[%c0_19, %c0_20] : memref<128x256xbf16, #tpu.memory_space<vmem>>, vector<128x256xbf16>
    %cst_21 = arith.constant dense<0.000000e+00> : vector<64x256xf32>
    %33 = tpu.matmul %31, %32, %cst_21 {dimension_numbers = #tpu.dot_dimension_numbers<[1], [0], [0], [1], [0, 0, 1, 1], [], []>} : vector<64x128xbf16>, vector<128x256xbf16>, vector<64x256xf32> -> vector<64x256xf32>
    %34 = vector.extract_strided_slice %1 {offsets = [2, 0], sizes = [1, 256], strides = [1, 1]} : vector<8x256xf32> to vector<1x256xf32>
    %35 = vector.broadcast %34 : vector<1x256xf32> to vector<64x256xf32>
    %36 = arith.addf %33, %35 : vector<64x256xf32>
    %c0_22 = arith.constant 0 : index
    %c0_23 = arith.constant 0 : index
    %37 = vector.load %arg8[%c0_22, %c0_23] : memref<64x256xf32, #tpu.memory_space<vmem>>, vector<64x256xf32>
    tpu.vector_store %arg8[%c0_22, %c0_23], %36 {strides = array<i32>} : memref<64x256xf32, #tpu.memory_space<vmem>>, vector<64x256xf32>,
    return
  }
  func.func @transform_0(%arg0: i32) -> (i32, i32, i32) {
    %c0_i32 = arith.constant 0 : i32
    %c0_i32_0 = arith.constant 0 : i32
    %c0_i32_1 = arith.constant 0 : i32
    return %arg0, %c0_i32, %c0_i32_0 : i32, i32, i32
  }
  func.func @transform_1(%arg0: i32) -> (i32, i32, i32) {
    %c0_i32 = arith.constant 0 : i32
    %c0_i32_0 = arith.constant 0 : i32
    %c0_i32_1 = arith.constant 0 : i32
    return %arg0, %c0_i32, %c0_i32_0 : i32, i32, i32
  }
  func.func @transform_2(%arg0: i32) -> (i32, i32) {
    %c0_i32 = arith.constant 0 : i32
    %c0_i32_0 = arith.constant 0 : i32
    %c0_i32_1 = arith.constant 0 : i32
    return %c0_i32, %c0_i32_0 : i32, i32
  }
  func.func @transform_3(%arg0: i32) -> (i32, i32) {
    %c0_i32 = arith.constant 0 : i32
    %c0_i32_0 = arith.constant 0 : i32
    %c0_i32_1 = arith.constant 0 : i32
    return %c0_i32, %c0_i32_0 : i32, i32
  }
  func.func @transform_4(%arg0: i32) -> (i32, i32) {
    %c0_i32 = arith.constant 0 : i32
    %c0_i32_0 = arith.constant 0 : i32
    %c0_i32_1 = arith.constant 0 : i32
    return %c0_i32, %c0_i32_0 : i32, i32
  }
  func.func @transform_5(%arg0: i32) -> (i32, i32) {
    %c0_i32 = arith.constant 0 : i32
    %c0_i32_0 = arith.constant 0 : i32
    %c0_i32_1 = arith.constant 0 : i32
    return %c0_i32, %c0_i32_0 : i32, i32
  }
  func.func @transform_6(%arg0: i32) -> (i32, i32) {
    %c0_i32 = arith.constant 0 : i32
    %c0_i32_0 = arith.constant 0 : i32
    return %arg0, %c0_i32 : i32, i32
  }
  func.func @transform_7(%arg0: i32) -> (i32, i32) {
    %c0_i32 = arith.constant 0 : i32
    %c0_i32_0 = arith.constant 0 : i32
    return %arg0, %c0_i32 : i32, i32
  }
}

</mosaic_0001>

<llo_original>
// kernel: gcn_forward.1
$region0: #{gcn_forward.1}
  #allocation0 [shape = 'u32[]', space=smem, size = 0x4, offset = 0x4, fixed_abs, tag = 'smem constant byte address 0x4 - core index']
  #allocation1 [shape = 'u32[144,128]{1,0:T(1,128)}', space=vmem, size = 0x12000, scoped, tag = 'internal scratch']
  %s0 = inlined_call_operand.vmem [shape: bf16[8,16,16], index: 0, kind: input, shape index: {}]
  %s1 = inlined_call_operand.vmem [shape: bf16[8,16,4], index: 1, kind: input, shape index: {}]
  %s2 = inlined_call_operand.vmem [shape: bf16[4,128], index: 2, kind: input, shape index: {}]
  %s3 = inlined_call_operand.hbm [shape: bf16[128,128], index: 3, kind: input, shape index: {}]
  %s4 = inlined_call_operand.hbm [shape: bf16[128,256], index: 4, kind: input, shape index: {}]
  %s5 = inlined_call_operand.vmem [shape: f32[8,256], index: 5, kind: input, shape index: {}]
  %s6 = inlined_call_operand.hbm [shape: f32[128,128], index: 6, kind: output, shape index: {0}]
  %s7 = inlined_call_operand.hbm [shape: f32[128,256], index: 7, kind: output, shape index: {1}]
  %8 = xla_tuple %s6, %s7
  %s9 = sld [smem:[#allocation0]]
  $region73: #{gcn_forward.1} parent=0
    _
  %s11 = ssub.s32 1, %s9
  %s12 = scalar_select 0, %s11, %s9
  $region1: #{gcn_forward.1} parent=0
    #allocation2 [shape = 'u8[32768]{0}', space=vmem, size = 0x8000, scoped, tag = 'input window, operand 3, single buffered']
    #allocation3 [shape = 's32[2]{0}', space=sflag, size = 0x8, scoped, tag = 'scoped memory for gcn_forward.1']
    #allocation4 [shape = 's32[2]{0}', space=sflag, size = 0x8, scoped, tag = 'scoped memory for gcn_forward.1']
    #allocation5 [shape = 'u8[65536]{0}', space=vmem, size = 0x10000, scoped, tag = 'input window, operand 4, single buffered']
    #allocation6 [shape = 's32[1]{0}', space=sflag, size = 0x4, scoped, tag = 'scoped memory for gcn_forward.1']
    #allocation7 [shape = 'u8[65536]{0}', space=vmem, size = 0x10000, scoped, tag = 'output window, operand 0']
    #allocation8 [shape = 'u8[131072]{0}', space=vmem, size = 0x20000, scoped, tag = 'output window, operand 1']
    #allocation9 [shape = 's32[2]{0}', space=sflag, size = 0x8, scoped, tag = 'scoped memory for gcn_forward.1']
    %13 = vsyncpa [#allocation3], 0
    %14 = vsyncpa [#allocation6], 0
    %15 = vsyncpa [#allocation4], 0
    %s16 = scalar_lea.sflag [#allocation4], 1
    %17 = vsyncpa %s16, 0
    %18 = vsyncpa [#allocation9], 0
    %s19 = scalar_lea.sflag [#allocation9], 1
    %20 = vsyncpa %s19, 0
    loop: start=0, step=1, limit=4
    $region2: #{gcn_forward.1} parent=1 // loop_pre_header
      _
    $region3: #{gcn_forward.1} parent=1 // loop_header
      %s22 = sphi 0, %s26
      %p23 = scmp.ge.s32.totalorder %s22, 4
      %s32 = sphi 0, %s34
      %s35 = sphi 0, %s32
      %s36 = sphi 0, %s35
      %s52 = sphi 0, %s36
      %s58 = sphi 0, %s60
      %s61 = sphi 0, %s58
      %s62 = sphi 0, %s61
      %s78 = sphi 0, %s62
      %s82 = sphi 0, %s82
      %s84 = sphi 0, %s82
      %s85 = sphi 0, %s84
      %s99 = sphi 0, %s85
      %s103 = sphi 0, %s103
      %s105 = sphi 0, %s103
      %s106 = sphi 0, %s105
      %s120 = sphi 0, %s106
      %s124 = sphi 0, %s124
      %s126 = sphi 0, %s124
      %s127 = sphi 0, %s126
      %s141 = sphi 0, %s127
      %s145 = sphi 0, %s145
      %s147 = sphi 0, %s145
      %s148 = sphi 0, %s147
      %s162 = sphi 0, %s148
      %s168 = sphi 0, %s170
      %s171 = sphi 0, %s168
      %s172 = sphi 0, %s171
      %s188 = sphi 0, %s172
      %s194 = sphi 0, %s196
      %s197 = sphi 0, %s194
      %s198 = sphi 0, %s197
      %s214 = sphi 0, %s198
    $region4: #{gcn_forward.1} parent=1 // loop_header_branch
      %25 = sbr.rel (%p23) target = $region8
    $region5: #{gcn_forward.1} parent=1 // loop_body
      %s27 = ssub.s32 %s22, 1
      %s28 = ssub.s32 %s22, 2
      %s29 = sadd.s32 %s22, 1
      %s30 = ssub.s32 %s22, %s29
      %p31 = scmp.eq.s32.totalorder %s30, 0
      %s33 = sadd.s32 %s32, 1
      %s34 = scalar_select %p31, %s32, %s33
      %p37 = pneg %p31
      %p38 = scmp.eq.s32.totalorder %s22, 1
      %p39 = por %p37, %p38
      %p40 = scmp.ne.s32.totalorder %s32, %s35
      %p41 = scmp.eq.s32.totalorder %s22, 0
      %p42 = por %p40, %p41
      %p43 = scmp.ne.s32.totalorder %s32, %s35
      %p44 = scmp.eq.s32.totalorder %s27, 1
      %p45 = por %p43, %p44
      %p46 = scmp.ne.s32.totalorder %s35, %s36
      %p47 = scmp.eq.s32.totalorder %s27, 0
      %p48 = por %p46, %p47
      %p49 = scmp.ne.s32.totalorder %s35, %s36
      %p50 = scmp.eq.s32.totalorder %s28, 1
      %p51 = por %p49, %p50
      %p53 = scmp.ne.s32.totalorder %s36, %s52
      %p54 = scmp.eq.s32.totalorder %s28, 0
      %p55 = por %p53, %p54
      %s56 = ssub.s32 %s22, %s29
      %p57 = scmp.eq.s32.totalorder %s56, 0
      %s59 = sadd.s32 %s58, 1
      %s60 = scalar_select %p57, %s58, %s59
      %p63 = pneg %p57
      %p64 = scmp.eq.s32.totalorder %s22, 1
      %p65 = por %p63, %p64
      %p66 = scmp.ne.s32.totalorder %s58, %s61
      %p67 = scmp.eq.s32.totalorder %s22, 0
      %p68 = por %p66, %p67
      %p69 = scmp.ne.s32.totalorder %s58, %s61
      %p70 = scmp.eq.s32.totalorder %s27, 1
      %p71 = por %p69, %p70
      %p72 = scmp.ne.s32.totalorder %s61, %s62
      %p73 = scmp.eq.s32.totalorder %s27, 0
      %p74 = por %p72, %p73
      %p75 = scmp.ne.s32.totalorder %s61, %s62
      %p76 = scmp.eq.s32.totalorder %s28, 1
      %p77 = por %p75, %p76
      %p79 = scmp.ne.s32.totalorder %s62, %s78
      %p80 = scmp.eq.s32.totalorder %s28, 0
      %p81 = por %p79, %p80
      %s83 = sadd.s32 %s82, 1
      %p86 = scmp.eq.s32.totalorder %s22, 1
      %p87 = scmp.ne.s32.totalorder %s82, %s84
      %p88 = scmp.eq.s32.totalorder %s22, 0
      %p89 = por %p87, %p88
      %p90 = scmp.ne.s32.totalorder %s82, %s84
      %p91 = scmp.eq.s32.totalorder %s27, 1
      %p92 = por %p90, %p91
      %p93 = scmp.ne.s32.totalorder %s84, %s85
      %p94 = scmp.eq.s32.totalorder %s27, 0
      %p95 = por %p93, %p94
      %p96 = scmp.ne.s32.totalorder %s84, %s85
      %p97 = scmp.eq.s32.totalorder %s28, 1
      %p98 = por %p96, %p97
      %p100 = scmp.ne.s32.totalorder %s85, %s99
      %p101 = scmp.eq.s32.totalorder %s28, 0
      %p102 = por %p100, %p101
      %s104 = sadd.s32 %s103, 1
      %p107 = scmp.eq.s32.totalorder %s22, 1
      %p108 = scmp.ne.s32.totalorder %s103, %s105
      %p109 = scmp.eq.s32.totalorder %s22, 0
      %p110 = por %p108, %p109
      %p111 = scmp.ne.s32.totalorder %s103, %s105
      %p112 = scmp.eq.s32.totalorder %s27, 1
      %p113 = por %p111, %p112
      %p114 = scmp.ne.s32.totalorder %s105, %s106
      %p115 = scmp.eq.s32.totalorder %s27, 0
      %p116 = por %p114, %p115
      %p117 = scmp.ne.s32.totalorder %s105, %s106
      %p118 = scmp.eq.s32.totalorder %s28, 1
      %p119 = por %p117, %p118
      %p121 = scmp.ne.s32.totalorder %s106, %s120
      %p122 = scmp.eq.s32.totalorder %s28, 0
      %p123 = por %p121, %p122
      %s125 = sadd.s32 %s124, 1
      %p128 = scmp.eq.s32.totalorder %s22, 1
      %p129 = scmp.ne.s32.totalorder %s124, %s126
      %p130 = scmp.eq.s32.totalorder %s22, 0
      %p131 = por %p129, %p130
      %p132 = scmp.ne.s32.totalorder %s124, %s126
      %p133 = scmp.eq.s32.totalorder %s27, 1
      %p134 = por %p132, %p133
      %p135 = scmp.ne.s32.totalorder %s126, %s127
      %p136 = scmp.eq.s32.totalorder %s27, 0
      %p137 = por %p135, %p136
      %p138 = scmp.ne.s32.totalorder %s126, %s127
      %p139 = scmp.eq.s32.totalorder %s28, 1
      %p140 = por %p138, %p139
      %p142 = scmp.ne.s32.totalorder %s127, %s141
      %p143 = scmp.eq.s32.totalorder %s28, 0
      %p144 = por %p142, %p143
      %s146 = sadd.s32 %s145, 1
      %p149 = scmp.eq.s32.totalorder %s22, 1
      %p150 = scmp.ne.s32.totalorder %s145, %s147
      %p151 = scmp.eq.s32.totalorder %s22, 0
      %p152 = por %p150, %p151
      %p153 = scmp.ne.s32.totalorder %s145, %s147
      %p154 = scmp.eq.s32.totalorder %s27, 1
      %p155 = por %p153, %p154
      %p156 = scmp.ne.s32.totalorder %s147, %s148
      %p157 = scmp.eq.s32.totalorder %s27, 0
      %p158 = por %p156, %p157
      %p159 = scmp.ne.s32.totalorder %s147, %s148
      %p160 = scmp.eq.s32.totalorder %s28, 1
      %p161 = por %p159, %p160
      %p163 = scmp.ne.s32.totalorder %s148, %s162
      %p164 = scmp.eq.s32.totalorder %s28, 0
      %p165 = por %p163, %p164
      %s166 = ssub.s32 %s22, %s29
      %p167 = scmp.eq.s32.totalorder %s166, 0
      %s169 = sadd.s32 %s168, 1
      %s170 = scalar_select %p167, %s168, %s169
      %p173 = pneg %p167
      %p174 = scmp.eq.s32.totalorder %s22, 1
      %p175 = por %p173, %p174
      %p176 = scmp.ne.s32.totalorder %s168, %s171
      %p177 = scmp.eq.s32.totalorder %s22, 0
      %p178 = por %p176, %p177
      %p179 = scmp.ne.s32.totalorder %s168, %s171
      %p180 = scmp.eq.s32.totalorder %s27, 1
      %p181 = por %p179, %p180
      %p182 = scmp.ne.s32.totalorder %s171, %s172
      %p183 = scmp.eq.s32.totalorder %s27, 0
      %p184 = por %p182, %p183
      %p185 = scmp.ne.s32.totalorder %s171, %s172
      %p186 = scmp.eq.s32.totalorder %s28, 1
      %p187 = por %p185, %p186
      %p189 = scmp.ne.s32.totalorder %s172, %s188
      %p190 = scmp.eq.s32.totalorder %s28, 0
      %p191 = por %p189, %p190
      %s192 = ssub.s32 %s22, %s29
      %p193 = scmp.eq.s32.totalorder %s192, 0
      %s195 = sadd.s32 %s194, 1
      %s196 = scalar_select %p193, %s194, %s195
      %p199 = pneg %p193
      %p200 = scmp.eq.s32.totalorder %s22, 1
      %p201 = por %p199, %p200
      %p202 = scmp.ne.s32.totalorder %s194, %s197
      %p203 = scmp.eq.s32.totalorder %s22, 0
      %p204 = por %p202, %p203
      %p205 = scmp.ne.s32.totalorder %s194, %s197
      %p206 = scmp.eq.s32.totalorder %s27, 1
      %p207 = por %p205, %p206
      %p208 = scmp.ne.s32.totalorder %s197, %s198
      %p209 = scmp.eq.s32.totalorder %s27, 0
      %p210 = por %p208, %p209
      %p211 = scmp.ne.s32.totalorder %s197, %s198
      %p212 = scmp.eq.s32.totalorder %s28, 1
      %p213 = por %p211, %p212
      %p215 = scmp.ne.s32.totalorder %s198, %s214
      %p216 = scmp.eq.s32.totalorder %s28, 0
      %p217 = por %p215, %p216
      %p218 = scmp.le.s32.totalorder 1, %s22
      %p219 = scmp.lt.s32.totalorder %s22, 3
      %p220 = pnand %p218, %p219
      %p221 = pneg %p220
      // Predicated region
      $region9: #{gcn_forward.1} parent=5 // pred_check
        _
      $region10: #{gcn_forward.1} parent=5 // pred_check_branch
        %223 = sbr.rel (%p220) target = $region12
      $region11: #{gcn_forward.1} parent=5 // pred_region
        %s224 = ssub.s32 %s22, 1
        // Predicated region
        $region13: #{gcn_forward.1} parent=11 // pred_check
          %p225 = pneg %p95
        $region14: #{gcn_forward.1} parent=11 // pred_check_branch
          %227 = sbr.rel (%p225) target = $region16
        $region15: #{gcn_forward.1} parent=11 // pred_region
          _
        $region16: #{gcn_forward.1} parent=11 // pred_fallthru
          _
        // Predicated region
        $region17: #{gcn_forward.1} parent=11 // pred_check
          %p228 = pneg %p116
        $region18: #{gcn_forward.1} parent=11 // pred_check_branch
          %230 = sbr.rel (%p228) target = $region20
        $region19: #{gcn_forward.1} parent=11 // pred_region
          %s232 = ssub.s32 1024, 1024
          %233 = vsyncadd [#allocation3], %s232
          %s234 = sshll.u32 [#allocation2], 4
          %s235 = int_to_ptr.vmem [resolvable:$true] %s234
          %240 = dma.hbm_to_vmem [thread:$0]  %s3, 1024, %s235, [#allocation3], 64, 64, 4
        $region20: #{gcn_forward.1} parent=11 // pred_fallthru
          _
        // Predicated region
        $region21: #{gcn_forward.1} parent=11 // pred_check
          %p241 = pneg %p137
        $region22: #{gcn_forward.1} parent=11 // pred_check_branch
          %243 = sbr.rel (%p241) target = $region24
        $region23: #{gcn_forward.1} parent=11 // pred_region
          %s245 = ssub.s32 2048, 2048
          %246 = vsyncadd [#allocation6], %s245
          %s247 = sshll.u32 [#allocation5], 4
          %s248 = int_to_ptr.vmem [resolvable:$true] %s247
          %253 = dma.hbm_to_vmem [thread:$0]  %s4, 2048, %s248, [#allocation6], 128, 128, 8
        $region24: #{gcn_forward.1} parent=11 // pred_fallthru
          _
        // Predicated region
        $region25: #{gcn_forward.1} parent=11 // pred_check
          %p254 = pneg %p158
        $region26: #{gcn_forward.1} parent=11 // pred_check_branch
          %256 = sbr.rel (%p254) target = $region28
        $region27: #{gcn_forward.1} parent=11 // pred_region
          _
        $region28: #{gcn_forward.1} parent=11 // pred_fallthru
          _
      $region12: #{gcn_forward.1} parent=5 // pred_fallthru
        _
      %p257 = scmp.lt.s32.totalorder %s22, 2
      // Predicated region
      $region29: #{gcn_forward.1} parent=5 // pred_check
        %p258 = pneg %p257
      $region30: #{gcn_forward.1} parent=5 // pred_check_branch
        %260 = sbr.rel (%p258) target = $region32
      $region31: #{gcn_forward.1} parent=5 // pred_region
        // Predicated region
        $region33: #{gcn_forward.1} parent=31 // pred_check
          %p261 = pneg %p42
        $region34: #{gcn_forward.1} parent=31 // pred_check_branch
          %263 = sbr.rel (%p261) target = $region36
        $region35: #{gcn_forward.1} parent=31 // pred_region
          %s264 = smul.u32 4, %s22
          %p265 = scmp.lt.s32.totalorder %s264, 7
          %s266 = scalar_select %p265, %s264, 7
          %s267 = smul.addr %s266, 2
          %s268 = smul.addr %s267, 4
          %s269 = scalar_lea.vmem %s0, %s268
          %s270 = smul.u32 4, %s22
        $region36: #{gcn_forward.1} parent=31 // pred_fallthru
          _
        // Predicated region
        $region37: #{gcn_forward.1} parent=31 // pred_check
          %p271 = pneg %p68
        $region38: #{gcn_forward.1} parent=31 // pred_check_branch
          %273 = sbr.rel (%p271) target = $region40
        $region39: #{gcn_forward.1} parent=31 // pred_region
          %s274 = smul.u32 4, %s22
          %p275 = scmp.lt.s32.totalorder %s274, 7
          %s276 = scalar_select %p275, %s274, 7
          %s277 = smul.addr %s276, 2
          %s278 = smul.addr %s277, 4
          %s279 = scalar_lea.vmem %s1, %s278
          %s280 = smul.u32 4, %s22
        $region40: #{gcn_forward.1} parent=31 // pred_fallthru
          _
      $region32: #{gcn_forward.1} parent=5 // pred_fallthru
        _
      %p281 = scmp.le.s32.totalorder 1, %s22
      %p282 = scmp.lt.s32.totalorder %s22, 3
      %p283 = pnand %p281, %p282
      %p284 = pneg %p283
      // Predicated region
      $region41: #{gcn_forward.1} parent=5 // pred_check
        _
      $region42: #{gcn_forward.1} parent=5 // pred_check_branch
        %286 = sbr.rel (%p283) target = $region44
      $region43: #{gcn_forward.1} parent=5 // pred_region
        %s287 = ssub.s32 %s22, 1
        // Predicated region
        $region45: #{gcn_forward.1} parent=43 // pred_check
          %p288 = pneg %p116
        $region46: #{gcn_forward.1} parent=43 // pred_check_branch
          %290 = sbr.rel (%p288) target = $region48
        $region47: #{gcn_forward.1} parent=43 // pred_region
          %291 = dma.done [#allocation3], 1024
        $region48: #{gcn_forward.1} parent=43 // pred_fallthru
          _
        // Predicated region
        $region49: #{gcn_forward.1} parent=43 // pred_check
          %p292 = pneg %p137
        $region50: #{gcn_forward.1} parent=43 // pred_check_branch
          %294 = sbr.rel (%p292) target = $region52
        $region51: #{gcn_forward.1} parent=43 // pred_region
          %295 = dma.done [#allocation6], 2048
        $region52: #{gcn_forward.1} parent=43 // pred_fallthru
          _
        %s296 = smul.u32 4, %s27
        %p297 = scmp.lt.s32.totalorder %s296, 7
        %s298 = scalar_select %p297, %s296, 7
        %s299 = smul.addr %s298, 2
        %s300 = smul.addr %s299, 4
        %s301 = scalar_lea.vmem %s0, %s300
        %p302 = pneg %p48
        %p303 = pneg %p45
        %s304 = smul.u32 4, %s27
        %p305 = scmp.lt.s32.totalorder %s304, 7
        %s306 = scalar_select %p305, %s304, 7
        %s307 = smul.addr %s306, 2
        %s308 = smul.addr %s307, 4
        %s309 = scalar_lea.vmem %s1, %s308
        %p310 = pneg %p74
        %p311 = pneg %p71
        %p312 = pneg %p95
        %p313 = pneg %p92
        %p314 = pneg %p116
        %p315 = pneg %p113
        %p316 = pneg %p137
        %p317 = pneg %p134
        %p318 = pneg %p158
        %p319 = pneg %p155
        %p320 = pneg %p184
        %p321 = pneg %p181
        %s322 = sand.u32 %s171, 1
        %s323 = scalar_lea.sflag [#allocation4], %s322
        %s324 = sand.u32 %s171, 1
        %s325 = smul.addr %s324, 64
        %s326 = scalar_lea.vmem [#allocation7], %s325
        %p327 = pneg %p210
        %p328 = pneg %p207
        %s329 = sand.u32 %s197, 1
        %s330 = scalar_lea.sflag [#allocation9], %s329
        %s331 = sand.u32 %s197, 1
        %s332 = smul.addr %s331, 128
        %s333 = scalar_lea.vmem [#allocation8], %s332
        %s334 = smul.u32 4, %s27
        %p335 = scmp.lt.s32.totalorder %s334, 7
        %s336 = scalar_select %p335, %s334, 7
        %s337 = smul.addr %s336, 2
        %s338 = smul.addr %s337, 4
        %s339 = scalar_lea.vmem %s0, %s338
        %s340 = smul.u32 4, %s27
        %s341 = smul.u32 4, %s27
        %p342 = scmp.lt.s32.totalorder %s341, 7
        %s343 = scalar_select %p342, %s341, 7
        %s344 = smul.addr %s343, 2
        %s345 = smul.addr %s344, 4
        %s346 = scalar_lea.vmem %s1, %s345
        %s347 = smul.u32 4, %s27
        %s348 = smul.u32 8, %s27
        %s349 = smul.u32 8, %s27
        %v351 = vld [vmem:[%s339] sm:$0xf]
        %v352 = vld [vmem:[%s339 + $0x4] sm:$0xf]
        %v353 = vld [vmem:[%s339 + $0x8] sm:$0xf]
        %v354 = vld [vmem:[%s339 + $0xc] sm:$0xf]
        %v355 = vld [vmem:[%s339 + $0x10] sm:$0xf]
        %v356 = vld [vmem:[%s339 + $0x14] sm:$0xf]
        %v357 = vld [vmem:[%s339 + $0x18] sm:$0xf]
        %v358 = vld [vmem:[%s339 + $0x1c] sm:$0xf]
        %v359 = vld [vmem:[%s5] sm:$0xff]
        %v360 = vld [vmem:[%s5 + $0x8] sm:$0xff]
        %v361 = vld [vmem:[%s346] sm:$0xf]
        %v362 = vld [vmem:[%s346 + $0x4] sm:$0xf]
        %v363 = vld [vmem:[%s346 + $0x8] sm:$0xf]
        %v364 = vld [vmem:[%s346 + $0xc] sm:$0xf]
        %v365 = vld [vmem:[%s346 + $0x10] sm:$0xf]
        %v366 = vld [vmem:[%s346 + $0x14] sm:$0xf]
        %v367 = vld [vmem:[%s346 + $0x18] sm:$0xf]
        %v368 = vld [vmem:[%s346 + $0x1c] sm:$0xf]
        %v371 = vunpack.c.l.b16 %v351
        %v372 = vunpack.c.l.b16 %v352
        %v373 = vpack.c.b16 %v372, %v371
        %v376 = vunpack.c.l.b16 %v361
        %v377 = vunpack.c.l.b16 %v362
        %v378 = vpack.c.b16 %v377, %v376
        %vm380 = vcmask 130048
        %v382 = vsel %vm380, %v373, 0
        %384 = vmatprep.subr.bf16.mxu0 0
        %385 = vmatpush1.bf16.msra.mxu0 0
        %386 = vmatprep.subr.bf16.mxu0 0
        %387 = vmatpush1.bf16.msra.mxu0 0
        %388 = vmatprep.subr.bf16.mxu0 0
        %389 = vmatpush1.bf16.msra.mxu0 0
        %390 = vmatprep.subr.bf16.mxu0 0
        %391 = vmatpush1.bf16.msra.mxu0 0
        %392 = vmatprep.subr.bf16.mxu0 0
        %393 = vmatpush1.bf16.msra.mxu0 0
        %394 = vmatprep.subr.bf16.mxu0 0
        %395 = vmatpush1.bf16.msra.mxu0 0
        %396 = vmatprep.subr.bf16.mxu0 0
        %397 = vmatpush1.bf16.msra.mxu0 0
        %398 = vmatprep.subr.bf16.mxu0 0
        %399 = vmatpush1.bf16.msra.mxu0 %v378
        %400 = vmatprep.subr.bf16.mxu0 0
        %401 = vmatpush2.bf16.msra.mxu0 0
        %402 = vmatprep.subr.bf16.mxu0 0
        %403 = vmatpush2.bf16.msra.mxu0 0
        %404 = vmatprep.subr.bf16.mxu0 0
        %405 = vmatpush2.bf16.msra.mxu0 0
        %406 = vmatprep.subr.bf16.mxu0 0
        %407 = vmatpush2.bf16.msra.mxu0 0
        %408 = vmatprep.subr.bf16.mxu0 0
        %409 = vmatpush2.bf16.msra.mxu0 0
        %410 = vmatprep.subr.bf16.mxu0 0
        %411 = vmatpush2.bf16.msra.mxu0 0
        %412 = vmatprep.subr.bf16.mxu0 0
        %413 = vmatpush2.bf16.msra.mxu0 0
        %414 = vmatprep.subr.bf16.mxu0 0
        %415 = vmatpush2.bf16.msra.mxu0 0
        %416 = vmatprep.mubr.bf16.mxu0 0
        %417 = vmatmul.mubr.bf16.gmra.mxu0 %v382
        %v418 = vpop.f32.mrf.mxu0
        %v419 = vadd.f32 0.0, %v418
        %v420 = vpop.f32.mrf.mxu0
        %v421 = vpop.f32.mrf.mxu0
        %v422 = vadd.f32 0.0, %v421
        %v423 = vpop.f32.mrf.mxu0
        %424 = vdwg.mxu0
        %v427 = vunpack.c.l.b16 %v353
        %v428 = vunpack.c.l.b16 %v354
        %v429 = vpack.c.b16 %v428, %v427
        %v432 = vunpack.c.l.b16 %v363
        %v433 = vunpack.c.l.b16 %v364
        %v434 = vpack.c.b16 %v433, %v432
        %v437 = vsel %vm380, %v429, 0
        %439 = vmatprep.subr.bf16.mxu0 0
        %440 = vmatpush1.bf16.msra.mxu0 0
        %441 = vmatprep.subr.bf16.mxu0 0
        %442 = vmatpush1.bf16.msra.mxu0 0
        %443 = vmatprep.subr.bf16.mxu0 0
        %444 = vmatpush1.bf16.msra.mxu0 0
        %445 = vmatprep.subr.bf16.mxu0 0
        %446 = vmatpush1.bf16.msra.mxu0 0
        %447 = vmatprep.subr.bf16.mxu0 0
        %448 = vmatpush1.bf16.msra.mxu0 0
        %449 = vmatprep.subr.bf16.mxu0 0
        %450 = vmatpush1.bf16.msra.mxu0 0
        %451 = vmatprep.subr.bf16.mxu0 0
        %452 = vmatpush1.bf16.msra.mxu0 0
        %453 = vmatprep.subr.bf16.mxu0 0
        %454 = vmatpush1.bf16.msra.mxu0 %v434
        %455 = vmatprep.subr.bf16.mxu0 0
        %456 = vmatpush2.bf16.msra.mxu0 0
        %457 = vmatprep.subr.bf16.mxu0 0
        %458 = vmatpush2.bf16.msra.mxu0 0
        %459 = vmatprep.subr.bf16.mxu0 0
        %460 = vmatpush2.bf16.msra.mxu0 0
        %461 = vmatprep.subr.bf16.mxu0 0
        %462 = vmatpush2.bf16.msra.mxu0 0
        %463 = vmatprep.subr.bf16.mxu0 0
        %464 = vmatpush2.bf16.msra.mxu0 0
        %465 = vmatprep.subr.bf16.mxu0 0
        %466 = vmatpush2.bf16.msra.mxu0 0
        %467 = vmatprep.subr.bf16.mxu0 0
        %468 = vmatpush2.bf16.msra.mxu0 0
        %469 = vmatprep.subr.bf16.mxu0 0
        %470 = vmatpush2.bf16.msra.mxu0 0
        %471 = vmatprep.mubr.bf16.mxu0 0
        %472 = vmatmul.mubr.bf16.gmra.mxu0 %v437
        %v473 = vpop.f32.mrf.mxu0
        %v474 = vadd.f32 0.0, %v473
        %v475 = vpop.f32.mrf.mxu0
        %v476 = vpop.f32.mrf.mxu0
        %v477 = vadd.f32 0.0, %v476
        %v478 = vpop.f32.mrf.mxu0
        %479 = vdwg.mxu0
        %v482 = vunpack.c.l.b16 %v355
        %v483 = vunpack.c.l.b16 %v356
        %v484 = vpack.c.b16 %v483, %v482
        %v487 = vunpack.c.l.b16 %v365
        %v488 = vunpack.c.l.b16 %v366
        %v489 = vpack.c.b16 %v488, %v487
        %v492 = vsel %vm380, %v484, 0
        %494 = vmatprep.subr.bf16.mxu0 0
        %495 = vmatpush1.bf16.msra.mxu0 0
        %496 = vmatprep.subr.bf16.mxu0 0
        %497 = vmatpush1.bf16.msra.mxu0 0
        %498 = vmatprep.subr.bf16.mxu0 0
        %499 = vmatpush1.bf16.msra.mxu0 0
        %500 = vmatprep.subr.bf16.mxu0 0
        %501 = vmatpush1.bf16.msra.mxu0 0
        %502 = vmatprep.subr.bf16.mxu0 0
        %503 = vmatpush1.bf16.msra.mxu0 0
        %504 = vmatprep.subr.bf16.mxu0 0
        %505 = vmatpush1.bf16.msra.mxu0 0
        %506 = vmatprep.subr.bf16.mxu0 0
        %507 = vmatpush1.bf16.msra.mxu0 0
        %508 = vmatprep.subr.bf16.mxu0 0
        %509 = vmatpush1.bf16.msra.mxu0 %v489
        %510 = vmatprep.subr.bf16.mxu0 0
        %511 = vmatpush2.bf16.msra.mxu0 0
        %512 = vmatprep.subr.bf16.mxu0 0
        %513 = vmatpush2.bf16.msra.mxu0 0
        %514 = vmatprep.subr.bf16.mxu0 0
        %515 = vmatpush2.bf16.msra.mxu0 0
        %516 = vmatprep.subr.bf16.mxu0 0
        %517 = vmatpush2.bf16.msra.mxu0 0
        %518 = vmatprep.subr.bf16.mxu0 0
        %519 = vmatpush2.bf16.msra.mxu0 0
        %520 = vmatprep.subr.bf16.mxu0 0
        %521 = vmatpush2.bf16.msra.mxu0 0
        %522 = vmatprep.subr.bf16.mxu0 0
        %523 = vmatpush2.bf16.msra.mxu0 0
        %524 = vmatprep.subr.bf16.mxu0 0
        %525 = vmatpush2.bf16.msra.mxu0 0
        %526 = vmatprep.mubr.bf16.mxu0 0
        %527 = vmatmul.mubr.bf16.gmra.mxu0 %v492
        %v528 = vpop.f32.mrf.mxu0
        %v529 = vadd.f32 0.0, %v528
        %v530 = vpop.f32.mrf.mxu0
        %v531 = vpop.f32.mrf.mxu0
        %v532 = vadd.f32 0.0, %v531
        %v533 = vpop.f32.mrf.mxu0
        %534 = vdwg.mxu0
        %v537 = vunpack.c.l.b16 %v357
        %v538 = vunpack.c.l.b16 %v358
        %v539 = vpack.c.b16 %v538, %v537
        %v542 = vunpack.c.l.b16 %v367
        %v543 = vunpack.c.l.b16 %v368
        %v544 = vpack.c.b16 %v543, %v542
        %v547 = vsel %vm380, %v539, 0
        %549 = vmatprep.subr.bf16.mxu0 0
        %550 = vmatpush1.bf16.msra.mxu0 0
        %551 = vmatprep.subr.bf16.mxu0 0
        %552 = vmatpush1.bf16.msra.mxu0 0
        %553 = vmatprep.subr.bf16.mxu0 0
        %554 = vmatpush1.bf16.msra.mxu0 0
        %555 = vmatprep.subr.bf16.mxu0 0
        %556 = vmatpush1.bf16.msra.mxu0 0
        %557 = vmatprep.subr.bf16.mxu0 0
        %558 = vmatpush1.bf16.msra.mxu0 0
        %559 = vmatprep.subr.bf16.mxu0 0
        %560 = vmatpush1.bf16.msra.mxu0 0
        %561 = vmatprep.subr.bf16.mxu0 0
        %562 = vmatpush1.bf16.msra.mxu0 0
        %563 = vmatprep.subr.bf16.mxu0 0
        %564 = vmatpush1.bf16.msra.mxu0 %v544
        %565 = vmatprep.subr.bf16.mxu0 0
        %566 = vmatpush2.bf16.msra.mxu0 0
        %567 = vmatprep.subr.bf16.mxu0 0
        %568 = vmatpush2.bf16.msra.mxu0 0
        %569 = vmatprep.subr.bf16.mxu0 0
        %570 = vmatpush2.bf16.msra.mxu0 0
        %571 = vmatprep.subr.bf16.mxu0 0
        %572 = vmatpush2.bf16.msra.mxu0 0
        %573 = vmatprep.subr.bf16.mxu0 0
        %574 = vmatpush2.bf16.msra.mxu0 0
        %575 = vmatprep.subr.bf16.mxu0 0
        %576 = vmatpush2.bf16.msra.mxu0 0
        %577 = vmatprep.subr.bf16.mxu0 0
        %578 = vmatpush2.bf16.msra.mxu0 0
        %579 = vmatprep.subr.bf16.mxu0 0
        %580 = vmatpush2.bf16.msra.mxu0 0
        %581 = vmatprep.mubr.bf16.mxu0 0
        %582 = vmatmul.mubr.bf16.gmra.mxu0 %v547
        %v583 = vpop.f32.mrf.mxu0
        %v584 = vadd.f32 0.0, %v583
        %v585 = vpop.f32.mrf.mxu0
        %v586 = vpop.f32.mrf.mxu0
        %v587 = vadd.f32 0.0, %v586
        %v588 = vpop.f32.mrf.mxu0
        %589 = vdwg.mxu0
        %v590 = vpack.c.bf16 %v422, %v419
        %v591 = vpack.c.bf16 %v477, %v474
        %v592 = vpack.c.bf16 %v532, %v529
        %v593 = vpack.c.bf16 %v587, %v584
        %v594 = vld [vmem:[%s2] sm:$0x3]
        %v595 = vlaneseq
        %v596 = vshrl.u32 %v595, 7
        %v597 = vsub.s32 0, %v596
        %v598 = vrot.slane %v359, %v597
        %vm599 = vcmask 31744
        %v601 = vsel %vm599, %v590, 0
        %v604 = vsel %vm599, %v591, 0
        %v607 = vsel %vm599, %v592, 0
        %v610 = vsel %vm599, %v593, 0
        %vm612 = vcmask 1041408
        %v614 = vsel %vm612, %v594, 0
        %616 = vmatprep.subr.bf16.mxu0 0
        %617 = vmatpush1.bf16.msra.mxu0 0
        %618 = vmatprep.subr.bf16.mxu0 0
        %619 = vmatpush1.bf16.msra.mxu0 0
        %620 = vmatprep.subr.bf16.mxu0 0
        %621 = vmatpush1.bf16.msra.mxu0 0
        %622 = vmatprep.subr.bf16.mxu0 0
        %623 = vmatpush1.bf16.msra.mxu0 0
        %624 = vmatprep.subr.bf16.mxu0 0
        %625 = vmatpush1.bf16.msra.mxu0 0
        %626 = vmatprep.subr.bf16.mxu0 0
        %627 = vmatpush1.bf16.msra.mxu0 0
        %628 = vmatprep.subr.bf16.mxu0 0
        %629 = vmatpush1.bf16.msra.mxu0 0
        %630 = vmatprep.subr.bf16.mxu0 0
        %631 = vmatpush1.bf16.msra.mxu0 %v614
        %632 = vmatprep.subr.bf16.mxu0 0
        %633 = vmatpush2.bf16.msra.mxu0 0
        %634 = vmatprep.subr.bf16.mxu0 0
        %635 = vmatpush2.bf16.msra.mxu0 0
        %636 = vmatprep.subr.bf16.mxu0 0
        %637 = vmatpush2.bf16.msra.mxu0 0
        %638 = vmatprep.subr.bf16.mxu0 0
        %639 = vmatpush2.bf16.msra.mxu0 0
        %640 = vmatprep.subr.bf16.mxu0 0
        %641 = vmatpush2.bf16.msra.mxu0 0
        %642 = vmatprep.subr.bf16.mxu0 0
        %643 = vmatpush2.bf16.msra.mxu0 0
        %644 = vmatprep.subr.bf16.mxu0 0
        %645 = vmatpush2.bf16.msra.mxu0 0
        %646 = vmatprep.subr.bf16.mxu0 0
        %647 = vmatpush2.bf16.msra.mxu0 0
        %648 = vmatprep.mubr.bf16.mxu0 0
        %649 = vmatmul.mubr.bf16.gmra.mxu0 %v601
        %v650 = vpop.f32.mrf.mxu0
        %v651 = vadd.f32 %v598, %v650
        %v652 = vpop.f32.mrf.mxu0
        %v653 = vpop.f32.mrf.mxu0
        %v654 = vadd.f32 %v598, %v653
        %v655 = vpop.f32.mrf.mxu0
        %656 = vmatprep.mubr.bf16.mxu0 0
        %657 = vmatmul.mubr.bf16.gmra.mxu0 %v604
        %v658 = vpop.f32.mrf.mxu0
        %v659 = vadd.f32 %v598, %v658
        %v660 = vpop.f32.mrf.mxu0
        %v661 = vpop.f32.mrf.mxu0
        %v662 = vadd.f32 %v598, %v661
        %v663 = vpop.f32.mrf.mxu0
        %664 = vmatprep.mubr.bf16.mxu0 0
        %665 = vmatmul.mubr.bf16.gmra.mxu0 %v607
        %v666 = vpop.f32.mrf.mxu0
        %v667 = vadd.f32 %v598, %v666
        %v668 = vpop.f32.mrf.mxu0
        %v669 = vpop.f32.mrf.mxu0
        %v670 = vadd.f32 %v598, %v669
        %v671 = vpop.f32.mrf.mxu0
        %672 = vmatprep.mubr.bf16.mxu0 0
        %673 = vmatmul.mubr.bf16.gmra.mxu0 %v610
        %v674 = vpop.f32.mrf.mxu0
        %v675 = vadd.f32 %v598, %v674
        %v676 = vpop.f32.mrf.mxu0
        %v677 = vpop.f32.mrf.mxu0
        %v678 = vadd.f32 %v598, %v677
        %v679 = vpop.f32.mrf.mxu0
        %680 = vdwg.mxu0
        %vm681 = vcmp.ge.f32.partialorder %v651, 0.0
        %vm682 = vcmp.ge.f32.partialorder %v654, 0.0
        %vm683 = vcmp.ge.f32.partialorder %v659, 0.0
        %vm684 = vcmp.ge.f32.partialorder %v662, 0.0
        %vm685 = vcmp.ge.f32.partialorder %v667, 0.0
        %vm686 = vcmp.ge.f32.partialorder %v670, 0.0
        %vm687 = vcmp.ge.f32.partialorder %v675, 0.0
        %vm688 = vcmp.ge.f32.partialorder %v678, 0.0
        %v689 = vmul.f32 %v651, 0.02
        %v690 = vmul.f32 %v654, 0.02
        %v691 = vmul.f32 %v659, 0.02
        %v692 = vmul.f32 %v662, 0.02
        %v693 = vmul.f32 %v667, 0.02
        %v694 = vmul.f32 %v670, 0.02
        %v695 = vmul.f32 %v675, 0.02
        %v696 = vmul.f32 %v678, 0.02
        %v697 = vsel %vm681, %v651, %v689
        %v698 = vsel %vm682, %v654, %v690
        %v699 = vsel %vm683, %v659, %v691
        %v700 = vsel %vm684, %v662, %v692
        %v701 = vsel %vm685, %v667, %v693
        %v702 = vsel %vm686, %v670, %v694
        %v703 = vsel %vm687, %v675, %v695
        %v704 = vsel %vm688, %v678, %v696
        %v705 = vpack.c.bf16 %v698, %v697
        %v706 = vpack.c.bf16 %v700, %v699
        %v707 = vpack.c.bf16 %v702, %v701
        %v708 = vpack.c.bf16 %v704, %v703
        %709 = vmatprep.subr.bf16.mxu0 0
        %710 = vmatpush1.bf16.msra.mxu0 0
        %711 = vmatprep.subr.bf16.mxu0 0
        %712 = vmatpush1.bf16.msra.mxu0 0
        %713 = vmatprep.subr.bf16.mxu0 0
        %714 = vmatpush1.bf16.msra.mxu0 0
        %715 = vmatprep.subr.bf16.mxu0 0
        %716 = vmatpush1.bf16.msra.mxu0 0
        %717 = vmatprep.subr.bf16.mxu0 0
        %718 = vmatpush1.bf16.msra.mxu0 0
        %719 = vmatprep.subr.bf16.mxu0 0
        %720 = vmatpush1.bf16.msra.mxu0 0
        %721 = vmatprep.subr.bf16.mxu0 0
        %722 = vmatpush1.bf16.msra.mxu0 0
        %723 = vmatprep.subr.bf16.mxu0 0
        %724 = vmatpush1.bf16.msra.mxu0 %v705
        %725 = vmatprep.subr.bf16.mxu0 0
        %726 = vmatpush2.bf16.msra.mxu0 0
        %727 = vmatprep.subr.bf16.mxu0 0
        %728 = vmatpush2.bf16.msra.mxu0 0
        %729 = vmatprep.subr.bf16.mxu0 0
        %730 = vmatpush2.bf16.msra.mxu0 0
        %731 = vmatprep.subr.bf16.mxu0 0
        %732 = vmatpush2.bf16.msra.mxu0 0
        %733 = vmatprep.subr.bf16.mxu0 0
        %734 = vmatpush2.bf16.msra.mxu0 0
        %735 = vmatprep.subr.bf16.mxu0 0
        %736 = vmatpush2.bf16.msra.mxu0 0
        %737 = vmatprep.subr.bf16.mxu0 0
        %738 = vmatpush2.bf16.msra.mxu0 0
        %739 = vmatprep.subr.bf16.mxu0 0
        %740 = vmatpush2.bf16.msra.mxu0 0
        %741 = vmatprep.mubr.bf16.mxu0 0
        %742 = vmatmul.mubr.bf16.gmra.mxu0 %v382
        %v743 = vpop.f32.mrf.mxu0
        %v744 = vadd.f32 0.0, %v743
        %v745 = vpop.f32.mrf.mxu0
        %v746 = vpop.f32.mrf.mxu0
        %v747 = vadd.f32 0.0, %v746
        %v748 = vpop.f32.mrf.mxu0
        %749 = vdwg.mxu0
        %750 = vmatprep.subr.bf16.mxu0 0
        %751 = vmatpush1.bf16.msra.mxu0 0
        %752 = vmatprep.subr.bf16.mxu0 0
        %753 = vmatpush1.bf16.msra.mxu0 0
        %754 = vmatprep.subr.bf16.mxu0 0
        %755 = vmatpush1.bf16.msra.mxu0 0
        %756 = vmatprep.subr.bf16.mxu0 0
        %757 = vmatpush1.bf16.msra.mxu0 0
        %758 = vmatprep.subr.bf16.mxu0 0
        %759 = vmatpush1.bf16.msra.mxu0 0
        %760 = vmatprep.subr.bf16.mxu0 0
        %761 = vmatpush1.bf16.msra.mxu0 0
        %762 = vmatprep.subr.bf16.mxu0 0
        %763 = vmatpush1.bf16.msra.mxu0 0
        %764 = vmatprep.subr.bf16.mxu0 0
        %765 = vmatpush1.bf16.msra.mxu0 %v706
        %766 = vmatprep.subr.bf16.mxu0 0
        %767 = vmatpush2.bf16.msra.mxu0 0
        %768 = vmatprep.subr.bf16.mxu0 0
        %769 = vmatpush2.bf16.msra.mxu0 0
        %770 = vmatprep.subr.bf16.mxu0 0
        %771 = vmatpush2.bf16.msra.mxu0 0
        %772 = vmatprep.subr.bf16.mxu0 0
        %773 = vmatpush2.bf16.msra.mxu0 0
        %774 = vmatprep.subr.bf16.mxu0 0
        %775 = vmatpush2.bf16.msra.mxu0 0
        %776 = vmatprep.subr.bf16.mxu0 0
        %777 = vmatpush2.bf16.msra.mxu0 0
        %778 = vmatprep.subr.bf16.mxu0 0
        %779 = vmatpush2.bf16.msra.mxu0 0
        %780 = vmatprep.subr.bf16.mxu0 0
        %781 = vmatpush2.bf16.msra.mxu0 0
        %782 = vmatprep.mubr.bf16.mxu0 0
        %783 = vmatmul.mubr.bf16.gmra.mxu0 %v437
        %v784 = vpop.f32.mrf.mxu0
        %v785 = vadd.f32 0.0, %v784
        %v786 = vpop.f32.mrf.mxu0
        %v787 = vpop.f32.mrf.mxu0
        %v788 = vadd.f32 0.0, %v787
        %v789 = vpop.f32.mrf.mxu0
        %790 = vdwg.mxu0
        %791 = vmatprep.subr.bf16.mxu0 0
        %792 = vmatpush1.bf16.msra.mxu0 0
        %793 = vmatprep.subr.bf16.mxu0 0
        %794 = vmatpush1.bf16.msra.mxu0 0
        %795 = vmatprep.subr.bf16.mxu0 0
        %796 = vmatpush1.bf16.msra.mxu0 0
        %797 = vmatprep.subr.bf16.mxu0 0
        %798 = vmatpush1.bf16.msra.mxu0 0
        %799 = vmatprep.subr.bf16.mxu0 0
        %800 = vmatpush1.bf16.msra.mxu0 0
        %801 = vmatprep.subr.bf16.mxu0 0
        %802 = vmatpush1.bf16.msra.mxu0 0
        %803 = vmatprep.subr.bf16.mxu0 0
        %804 = vmatpush1.bf16.msra.mxu0 0
        %805 = vmatprep.subr.bf16.mxu0 0
        %806 = vmatpush1.bf16.msra.mxu0 %v707
        %807 = vmatprep.subr.bf16.mxu0 0
        %808 = vmatpush2.bf16.msra.mxu0 0
        %809 = vmatprep.subr.bf16.mxu0 0
        %810 = vmatpush2.bf16.msra.mxu0 0
        %811 = vmatprep.subr.bf16.mxu0 0
        %812 = vmatpush2.bf16.msra.mxu0 0
        %813 = vmatprep.subr.bf16.mxu0 0
        %814 = vmatpush2.bf16.msra.mxu0 0
        %815 = vmatprep.subr.bf16.mxu0 0
        %816 = vmatpush2.bf16.msra.mxu0 0
        %817 = vmatprep.subr.bf16.mxu0 0
        %818 = vmatpush2.bf16.msra.mxu0 0
        %819 = vmatprep.subr.bf16.mxu0 0
        %820 = vmatpush2.bf16.msra.mxu0 0
        %821 = vmatprep.subr.bf16.mxu0 0
        %822 = vmatpush2.bf16.msra.mxu0 0
        %823 = vmatprep.mubr.bf16.mxu0 0
        %824 = vmatmul.mubr.bf16.gmra.mxu0 %v492
        %v825 = vpop.f32.mrf.mxu0
        %v826 = vadd.f32 0.0, %v825
        %v827 = vpop.f32.mrf.mxu0
        %v828 = vpop.f32.mrf.mxu0
        %v829 = vadd.f32 0.0, %v828
        %v830 = vpop.f32.mrf.mxu0
        %831 = vdwg.mxu0
        %832 = vmatprep.subr.bf16.mxu0 0
        %833 = vmatpush1.bf16.msra.mxu0 0
        %834 = vmatprep.subr.bf16.mxu0 0
        %835 = vmatpush1.bf16.msra.mxu0 0
        %836 = vmatprep.subr.bf16.mxu0 0
        %837 = vmatpush1.bf16.msra.mxu0 0
        %838 = vmatprep.subr.bf16.mxu0 0
        %839 = vmatpush1.bf16.msra.mxu0 0
        %840 = vmatprep.subr.bf16.mxu0 0
        %841 = vmatpush1.bf16.msra.mxu0 0
        %842 = vmatprep.subr.bf16.mxu0 0
        %843 = vmatpush1.bf16.msra.mxu0 0
        %844 = vmatprep.subr.bf16.mxu0 0
        %845 = vmatpush1.bf16.msra.mxu0 0
        %846 = vmatprep.subr.bf16.mxu0 0
        %847 = vmatpush1.bf16.msra.mxu0 %v708
        %848 = vmatprep.subr.bf16.mxu0 0
        %849 = vmatpush2.bf16.msra.mxu0 0
        %850 = vmatprep.subr.bf16.mxu0 0
        %851 = vmatpush2.bf16.msra.mxu0 0
        %852 = vmatprep.subr.bf16.mxu0 0
        %853 = vmatpush2.bf16.msra.mxu0 0
        %854 = vmatprep.subr.bf16.mxu0 0
        %855 = vmatpush2.bf16.msra.mxu0 0
        %856 = vmatprep.subr.bf16.mxu0 0
        %857 = vmatpush2.bf16.msra.mxu0 0
        %858 = vmatprep.subr.bf16.mxu0 0
        %859 = vmatpush2.bf16.msra.mxu0 0
        %860 = vmatprep.subr.bf16.mxu0 0
        %861 = vmatpush2.bf16.msra.mxu0 0
        %862 = vmatprep.subr.bf16.mxu0 0
        %863 = vmatpush2.bf16.msra.mxu0 0
        %864 = vmatprep.mubr.bf16.mxu0 0
        %865 = vmatmul.mubr.bf16.gmra.mxu0 %v547
        %v866 = vpop.f32.mrf.mxu0
        %v867 = vadd.f32 0.0, %v866
        %v868 = vpop.f32.mrf.mxu0
        %v869 = vpop.f32.mrf.mxu0
        %v870 = vadd.f32 0.0, %v869
        %v871 = vpop.f32.mrf.mxu0
        %872 = vdwg.mxu0
        %v873 = vpack.c.bf16 %v747, %v744
        %v874 = vpack.c.bf16 %v788, %v785
        %v875 = vpack.c.bf16 %v829, %v826
        %v876 = vpack.c.bf16 %v870, %v867
        %v877 = vld [vmem:[#allocation2] sm:$0xf]
        %v878 = vld [vmem:[#allocation2 + $0x4] sm:$0xf]
        %v879 = vld [vmem:[#allocation2 + $0x8] sm:$0xf]
        %v880 = vld [vmem:[#allocation2 + $0xc] sm:$0xf]
        %v881 = vld [vmem:[#allocation2 + $0x10] sm:$0xf]
        %v882 = vld [vmem:[#allocation2 + $0x14] sm:$0xf]
        %v883 = vld [vmem:[#allocation2 + $0x18] sm:$0xf]
        %v884 = vld [vmem:[#allocation2 + $0x1c] sm:$0xf]
        %v885 = vld [vmem:[#allocation2 + $0x20] sm:$0xf]
        %v886 = vld [vmem:[#allocation2 + $0x24] sm:$0xf]
        %v887 = vld [vmem:[#allocation2 + $0x28] sm:$0xf]
        %v888 = vld [vmem:[#allocation2 + $0x2c] sm:$0xf]
        %v889 = vld [vmem:[#allocation2 + $0x30] sm:$0xf]
        %v890 = vld [vmem:[#allocation2 + $0x34] sm:$0xf]
        %v891 = vld [vmem:[#allocation2 + $0x38] sm:$0xf]
        %v892 = vld [vmem:[#allocation2 + $0x3c] sm:$0xf]
        %v893 = vlaneseq
        %v894 = vshrl.u32 %v893, 7
        %v895 = vsub.s32 1, %v894
        %v896 = vrot.slane %v359, %v895
        %v913 = vunpack.c.l.b16 %v877
        %v914 = vunpack.c.l.b16 %v878
        %v915 = vunpack.c.l.b16 %v879
        %v916 = vunpack.c.l.b16 %v880
        %v917 = vunpack.c.l.b16 %v881
        %v918 = vunpack.c.l.b16 %v882
        %v919 = vunpack.c.l.b16 %v883
        %v920 = vunpack.c.l.b16 %v884
        %v921 = vunpack.c.l.b16 %v885
        %v922 = vunpack.c.l.b16 %v886
        %v923 = vunpack.c.l.b16 %v887
        %v924 = vunpack.c.l.b16 %v888
        %v925 = vunpack.c.l.b16 %v889
        %v926 = vunpack.c.l.b16 %v890
        %v927 = vunpack.c.l.b16 %v891
        %v928 = vunpack.c.l.b16 %v892
        %v929 = vpack.c.b16 %v914, %v913
        %v930 = vpack.c.b16 %v916, %v915
        %v931 = vpack.c.b16 %v918, %v917
        %v932 = vpack.c.b16 %v920, %v919
        %v933 = vpack.c.b16 %v922, %v921
        %v934 = vpack.c.b16 %v924, %v923
        %v935 = vpack.c.b16 %v926, %v925
        %v936 = vpack.c.b16 %v928, %v927
        %945 = vmatprep.subr.bf16.mxu0 0
        %946 = vmatpush1.bf16.msra.mxu0 %v936
        %947 = vmatprep.subr.bf16.mxu0 0
        %948 = vmatpush1.bf16.msra.mxu0 %v935
        %949 = vmatprep.subr.bf16.mxu0 0
        %950 = vmatpush1.bf16.msra.mxu0 %v934
        %951 = vmatprep.subr.bf16.mxu0 0
        %952 = vmatpush1.bf16.msra.mxu0 %v933
        %953 = vmatprep.subr.bf16.mxu0 0
        %954 = vmatpush1.bf16.msra.mxu0 %v932
        %955 = vmatprep.subr.bf16.mxu0 0
        %956 = vmatpush1.bf16.msra.mxu0 %v931
        %957 = vmatprep.subr.bf16.mxu0 0
        %958 = vmatpush1.bf16.msra.mxu0 %v930
        %959 = vmatprep.subr.bf16.mxu0 0
        %960 = vmatpush1.bf16.msra.mxu0 %v929
        %961 = vmatprep.subr.bf16.mxu0 0
        %962 = vmatpush2.bf16.msra.mxu0 0
        %963 = vmatprep.subr.bf16.mxu0 0
        %964 = vmatpush2.bf16.msra.mxu0 0
        %965 = vmatprep.subr.bf16.mxu0 0
        %966 = vmatpush2.bf16.msra.mxu0 0
        %967 = vmatprep.subr.bf16.mxu0 0
        %968 = vmatpush2.bf16.msra.mxu0 0
        %969 = vmatprep.subr.bf16.mxu0 0
        %970 = vmatpush2.bf16.msra.mxu0 0
        %971 = vmatprep.subr.bf16.mxu0 0
        %972 = vmatpush2.bf16.msra.mxu0 0
        %973 = vmatprep.subr.bf16.mxu0 0
        %974 = vmatpush2.bf16.msra.mxu0 0
        %975 = vmatprep.subr.bf16.mxu0 0
        %976 = vmatpush2.bf16.msra.mxu0 0
        %977 = vmatprep.mubr.bf16.mxu0 0
        %978 = vmatmul.mubr.bf16.gmra.mxu0 %v873
        %v979 = vpop.f32.mrf.mxu0
        %v980 = vadd.f32 %v896, %v979
        %v981 = vpop.f32.mrf.mxu0
        %v982 = vpop.f32.mrf.mxu0
        %v983 = vadd.f32 %v896, %v982
        %v984 = vpop.f32.mrf.mxu0
        %985 = vmatprep.mubr.bf16.mxu0 0
        %986 = vmatmul.mubr.bf16.gmra.mxu0 %v874
        %v987 = vpop.f32.mrf.mxu0
        %v988 = vadd.f32 %v896, %v987
        %v989 = vpop.f32.mrf.mxu0
        %v990 = vpop.f32.mrf.mxu0
        %v991 = vadd.f32 %v896, %v990
        %v992 = vpop.f32.mrf.mxu0
        %993 = vmatprep.mubr.bf16.mxu0 0
        %994 = vmatmul.mubr.bf16.gmra.mxu0 %v875
        %v995 = vpop.f32.mrf.mxu0
        %v996 = vadd.f32 %v896, %v995
        %v997 = vpop.f32.mrf.mxu0
        %v998 = vpop.f32.mrf.mxu0
        %v999 = vadd.f32 %v896, %v998
        %v1000 = vpop.f32.mrf.mxu0
        %1001 = vmatprep.mubr.bf16.mxu0 0
        %1002 = vmatmul.mubr.bf16.gmra.mxu0 %v876
        %v1003 = vpop.f32.mrf.mxu0
        %v1004 = vadd.f32 %v896, %v1003
        %v1005 = vpop.f32.mrf.mxu0
        %v1006 = vpop.f32.mrf.mxu0
        %v1007 = vadd.f32 %v896, %v1006
        %v1008 = vpop.f32.mrf.mxu0
        %1009 = vdwg.mxu0
        %1010 = vst [vmem:[%s326] sm:$0xff] %v980
        %1011 = vst [vmem:[%s326 + $0x8] sm:$0xff] %v983
        %1012 = vst [vmem:[%s326 + $0x10] sm:$0xff] %v988
        %1013 = vst [vmem:[%s326 + $0x18] sm:$0xff] %v991
        %1014 = vst [vmem:[%s326 + $0x20] sm:$0xff] %v996
        %1015 = vst [vmem:[%s326 + $0x28] sm:$0xff] %v999
        %1016 = vst [vmem:[%s326 + $0x30] sm:$0xff] %v1004
        %1017 = vst [vmem:[%s326 + $0x38] sm:$0xff] %v1007
        %v1018 = vpack.c.bf16 %v983, %v980
        %v1019 = vpack.c.bf16 %v991, %v988
        %v1020 = vpack.c.bf16 %v999, %v996
        %v1021 = vpack.c.bf16 %v1007, %v1004
        %1022 = vmatprep.subr.bf16.mxu0 0
        %1023 = vmatpush1.bf16.msra.mxu0 0
        %1024 = vmatprep.subr.bf16.mxu0 0
        %1025 = vmatpush1.bf16.msra.mxu0 0
        %1026 = vmatprep.subr.bf16.mxu0 0
        %1027 = vmatpush1.bf16.msra.mxu0 0
        %1028 = vmatprep.subr.bf16.mxu0 0
        %1029 = vmatpush1.bf16.msra.mxu0 0
        %1030 = vmatprep.subr.bf16.mxu0 0
        %1031 = vmatpush1.bf16.msra.mxu0 0
        %1032 = vmatprep.subr.bf16.mxu0 0
        %1033 = vmatpush1.bf16.msra.mxu0 0
        %1034 = vmatprep.subr.bf16.mxu0 0
        %1035 = vmatpush1.bf16.msra.mxu0 0
        %1036 = vmatprep.subr.bf16.mxu0 0
        %1037 = vmatpush1.bf16.msra.mxu0 %v1018
        %1038 = vmatprep.subr.bf16.mxu0 0
        %1039 = vmatpush2.bf16.msra.mxu0 0
        %1040 = vmatprep.subr.bf16.mxu0 0
        %1041 = vmatpush2.bf16.msra.mxu0 0
        %1042 = vmatprep.subr.bf16.mxu0 0
        %1043 = vmatpush2.bf16.msra.mxu0 0
        %1044 = vmatprep.subr.bf16.mxu0 0
        %1045 = vmatpush2.bf16.msra.mxu0 0
        %1046 = vmatprep.subr.bf16.mxu0 0
        %1047 = vmatpush2.bf16.msra.mxu0 0
        %1048 = vmatprep.subr.bf16.mxu0 0
        %1049 = vmatpush2.bf16.msra.mxu0 0
        %1050 = vmatprep.subr.bf16.mxu0 0
        %1051 = vmatpush2.bf16.msra.mxu0 0
        %1052 = vmatprep.subr.bf16.mxu0 0
        %1053 = vmatpush2.bf16.msra.mxu0 0
        %1054 = vmatprep.mubr.bf16.mxu0 0
        %1055 = vmatmul.mubr.bf16.gmra.mxu0 %v382
        %v1056 = vpop.f32.mrf.mxu0
        %v1057 = vadd.f32 0.0, %v1056
        %v1058 = vpop.f32.mrf.mxu0
        %v1059 = vpop.f32.mrf.mxu0
        %v1060 = vadd.f32 0.0, %v1059
        %v1061 = vpop.f32.mrf.mxu0
        %1062 = vdwg.mxu0
        %1063 = vmatprep.subr.bf16.mxu0 0
        %1064 = vmatpush1.bf16.msra.mxu0 0
        %1065 = vmatprep.subr.bf16.mxu0 0
        %1066 = vmatpush1.bf16.msra.mxu0 0
        %1067 = vmatprep.subr.bf16.mxu0 0
        %1068 = vmatpush1.bf16.msra.mxu0 0
        %1069 = vmatprep.subr.bf16.mxu0 0
        %1070 = vmatpush1.bf16.msra.mxu0 0
        %1071 = vmatprep.subr.bf16.mxu0 0
        %1072 = vmatpush1.bf16.msra.mxu0 0
        %1073 = vmatprep.subr.bf16.mxu0 0
        %1074 = vmatpush1.bf16.msra.mxu0 0
        %1075 = vmatprep.subr.bf16.mxu0 0
        %1076 = vmatpush1.bf16.msra.mxu0 0
        %1077 = vmatprep.subr.bf16.mxu0 0
        %1078 = vmatpush1.bf16.msra.mxu0 %v1019
        %1079 = vmatprep.subr.bf16.mxu0 0
        %1080 = vmatpush2.bf16.msra.mxu0 0
        %1081 = vmatprep.subr.bf16.mxu0 0
        %1082 = vmatpush2.bf16.msra.mxu0 0
        %1083 = vmatprep.subr.bf16.mxu0 0
        %1084 = vmatpush2.bf16.msra.mxu0 0
        %1085 = vmatprep.subr.bf16.mxu0 0
        %1086 = vmatpush2.bf16.msra.mxu0 0
        %1087 = vmatprep.subr.bf16.mxu0 0
        %1088 = vmatpush2.bf16.msra.mxu0 0
        %1089 = vmatprep.subr.bf16.mxu0 0
        %1090 = vmatpush2.bf16.msra.mxu0 0
        %1091 = vmatprep.subr.bf16.mxu0 0
        %1092 = vmatpush2.bf16.msra.mxu0 0
        %1093 = vmatprep.subr.bf16.mxu0 0
        %1094 = vmatpush2.bf16.msra.mxu0 0
        %1095 = vmatprep.mubr.bf16.mxu0 0
        %1096 = vmatmul.mubr.bf16.gmra.mxu0 %v437
        %v1097 = vpop.f32.mrf.mxu0
        %v1098 = vadd.f32 0.0, %v1097
        %v1099 = vpop.f32.mrf.mxu0
        %v1100 = vpop.f32.mrf.mxu0
        %v1101 = vadd.f32 0.0, %v1100
        %v1102 = vpop.f32.mrf.mxu0
        %1103 = vdwg.mxu0
        %1104 = vmatprep.subr.bf16.mxu0 0
        %1105 = vmatpush1.bf16.msra.mxu0 0
        %1106 = vmatprep.subr.bf16.mxu0 0
        %1107 = vmatpush1.bf16.msra.mxu0 0
        %1108 = vmatprep.subr.bf16.mxu0 0
        %1109 = vmatpush1.bf16.msra.mxu0 0
        %1110 = vmatprep.subr.bf16.mxu0 0
        %1111 = vmatpush1.bf16.msra.mxu0 0
        %1112 = vmatprep.subr.bf16.mxu0 0
        %1113 = vmatpush1.bf16.msra.mxu0 0
        %1114 = vmatprep.subr.bf16.mxu0 0
        %1115 = vmatpush1.bf16.msra.mxu0 0
        %1116 = vmatprep.subr.bf16.mxu0 0
        %1117 = vmatpush1.bf16.msra.mxu0 0
        %1118 = vmatprep.subr.bf16.mxu0 0
        %1119 = vmatpush1.bf16.msra.mxu0 %v1020
        %1120 = vmatprep.subr.bf16.mxu0 0
        %1121 = vmatpush2.bf16.msra.mxu0 0
        %1122 = vmatprep.subr.bf16.mxu0 0
        %1123 = vmatpush2.bf16.msra.mxu0 0
        %1124 = vmatprep.subr.bf16.mxu0 0
        %1125 = vmatpush2.bf16.msra.mxu0 0
        %1126 = vmatprep.subr.bf16.mxu0 0
        %1127 = vmatpush2.bf16.msra.mxu0 0
        %1128 = vmatprep.subr.bf16.mxu0 0
        %1129 = vmatpush2.bf16.msra.mxu0 0
        %1130 = vmatprep.subr.bf16.mxu0 0
        %1131 = vmatpush2.bf16.msra.mxu0 0
        %1132 = vmatprep.subr.bf16.mxu0 0
        %1133 = vmatpush2.bf16.msra.mxu0 0
        %1134 = vmatprep.subr.bf16.mxu0 0
        %1135 = vmatpush2.bf16.msra.mxu0 0
        %1136 = vmatprep.mubr.bf16.mxu0 0
        %1137 = vmatmul.mubr.bf16.gmra.mxu0 %v492
        %v1138 = vpop.f32.mrf.mxu0
        %v1139 = vadd.f32 0.0, %v1138
        %v1140 = vpop.f32.mrf.mxu0
        %v1141 = vpop.f32.mrf.mxu0
        %v1142 = vadd.f32 0.0, %v1141
        %v1143 = vpop.f32.mrf.mxu0
        %1144 = vdwg.mxu0
        %1145 = vmatprep.subr.bf16.mxu0 0
        %1146 = vmatpush1.bf16.msra.mxu0 0
        %1147 = vmatprep.subr.bf16.mxu0 0
        %1148 = vmatpush1.bf16.msra.mxu0 0
        %1149 = vmatprep.subr.bf16.mxu0 0
        %1150 = vmatpush1.bf16.msra.mxu0 0
        %1151 = vmatprep.subr.bf16.mxu0 0
        %1152 = vmatpush1.bf16.msra.mxu0 0
        %1153 = vmatprep.subr.bf16.mxu0 0
        %1154 = vmatpush1.bf16.msra.mxu0 0
        %1155 = vmatprep.subr.bf16.mxu0 0
        %1156 = vmatpush1.bf16.msra.mxu0 0
        %1157 = vmatprep.subr.bf16.mxu0 0
        %1158 = vmatpush1.bf16.msra.mxu0 0
        %1159 = vmatprep.subr.bf16.mxu0 0
        %1160 = vmatpush1.bf16.msra.mxu0 %v1021
        %1161 = vmatprep.subr.bf16.mxu0 0
        %1162 = vmatpush2.bf16.msra.mxu0 0
        %1163 = vmatprep.subr.bf16.mxu0 0
        %1164 = vmatpush2.bf16.msra.mxu0 0
        %1165 = vmatprep.subr.bf16.mxu0 0
        %1166 = vmatpush2.bf16.msra.mxu0 0
        %1167 = vmatprep.subr.bf16.mxu0 0
        %1168 = vmatpush2.bf16.msra.mxu0 0
        %1169 = vmatprep.subr.bf16.mxu0 0
        %1170 = vmatpush2.bf16.msra.mxu0 0
        %1171 = vmatprep.subr.bf16.mxu0 0
        %1172 = vmatpush2.bf16.msra.mxu0 0
        %1173 = vmatprep.subr.bf16.mxu0 0
        %1174 = vmatpush2.bf16.msra.mxu0 0
        %1175 = vmatprep.subr.bf16.mxu0 0
        %1176 = vmatpush2.bf16.msra.mxu0 0
        %1177 = vmatprep.mubr.bf16.mxu0 0
        %1178 = vmatmul.mubr.bf16.gmra.mxu0 %v547
        %v1179 = vpop.f32.mrf.mxu0
        %v1180 = vadd.f32 0.0, %v1179
        %v1181 = vpop.f32.mrf.mxu0
        %v1182 = vpop.f32.mrf.mxu0
        %v1183 = vadd.f32 0.0, %v1182
        %v1184 = vpop.f32.mrf.mxu0
        %1185 = vdwg.mxu0
        %v1186 = vpack.c.bf16 %v1060, %v1057
        %v1187 = vpack.c.bf16 %v1101, %v1098
        %v1188 = vpack.c.bf16 %v1142, %v1139
        %v1189 = vpack.c.bf16 %v1183, %v1180
        %v1190 = vld [vmem:[#allocation5] sm:$0xff]
        %v1191 = vld [vmem:[#allocation5 + $0x8] sm:$0xff]
        %v1192 = vld [vmem:[#allocation5 + $0x10] sm:$0xff]
        %v1193 = vld [vmem:[#allocation5 + $0x18] sm:$0xff]
        %v1194 = vld [vmem:[#allocation5 + $0x20] sm:$0xff]
        %v1195 = vld [vmem:[#allocation5 + $0x28] sm:$0xff]
        %v1196 = vld [vmem:[#allocation5 + $0x30] sm:$0xff]
        %v1197 = vld [vmem:[#allocation5 + $0x38] sm:$0xff]
        %v1198 = vld [vmem:[#allocation5 + $0x40] sm:$0xff]
        %v1199 = vld [vmem:[#allocation5 + $0x48] sm:$0xff]
        %v1200 = vld [vmem:[#allocation5 + $0x50] sm:$0xff]
        %v1201 = vld [vmem:[#allocation5 + $0x58] sm:$0xff]
        %v1202 = vld [vmem:[#allocation5 + $0x60] sm:$0xff]
        %v1203 = vld [vmem:[#allocation5 + $0x68] sm:$0xff]
        %v1204 = vld [vmem:[#allocation5 + $0x70] sm:$0xff]
        %v1205 = vld [vmem:[#allocation5 + $0x78] sm:$0xff]
        %v1206 = vlaneseq
        %v1207 = vshrl.u32 %v1206, 7
        %v1208 = vsub.s32 2, %v1207
        %v1209 = vrot.slane %v359, %v1208
        %v1210 = vlaneseq
        %v1211 = vshrl.u32 %v1210, 7
        %v1212 = vsub.s32 2, %v1211
        %v1213 = vrot.slane %v360, %v1212
        %v1230 = vunpack.c.l.b16 %v1190
        %v1231 = vunpack.c.h.b16 %v1190
        %v1232 = vunpack.c.l.b16 %v1191
        %v1233 = vunpack.c.h.b16 %v1191
        %v1234 = vunpack.c.l.b16 %v1192
        %v1235 = vunpack.c.h.b16 %v1192
        %v1236 = vunpack.c.l.b16 %v1193
        %v1237 = vunpack.c.h.b16 %v1193
        %v1238 = vunpack.c.l.b16 %v1194
        %v1239 = vunpack.c.h.b16 %v1194
        %v1240 = vunpack.c.l.b16 %v1195
        %v1241 = vunpack.c.h.b16 %v1195
        %v1242 = vunpack.c.l.b16 %v1196
        %v1243 = vunpack.c.h.b16 %v1196
        %v1244 = vunpack.c.l.b16 %v1197
        %v1245 = vunpack.c.h.b16 %v1197
        %v1246 = vunpack.c.l.b16 %v1198
        %v1247 = vunpack.c.h.b16 %v1198
        %v1248 = vunpack.c.l.b16 %v1199
        %v1249 = vunpack.c.h.b16 %v1199
        %v1250 = vunpack.c.l.b16 %v1200
        %v1251 = vunpack.c.h.b16 %v1200
        %v1252 = vunpack.c.l.b16 %v1201
        %v1253 = vunpack.c.h.b16 %v1201
        %v1254 = vunpack.c.l.b16 %v1202
        %v1255 = vunpack.c.h.b16 %v1202
        %v1256 = vunpack.c.l.b16 %v1203
        %v1257 = vunpack.c.h.b16 %v1203
        %v1258 = vunpack.c.l.b16 %v1204
        %v1259 = vunpack.c.h.b16 %v1204
        %v1260 = vunpack.c.l.b16 %v1205
        %v1261 = vunpack.c.h.b16 %v1205
        %v1262 = vpack.c.b16 %v1232, %v1230
        %v1263 = vpack.c.b16 %v1233, %v1231
        %v1264 = vpack.c.b16 %v1236, %v1234
        %v1265 = vpack.c.b16 %v1237, %v1235
        %v1266 = vpack.c.b16 %v1240, %v1238
        %v1267 = vpack.c.b16 %v1241, %v1239
        %v1268 = vpack.c.b16 %v1244, %v1242
        %v1269 = vpack.c.b16 %v1245, %v1243
        %v1270 = vpack.c.b16 %v1248, %v1246
        %v1271 = vpack.c.b16 %v1249, %v1247
        %v1272 = vpack.c.b16 %v1252, %v1250
        %v1273 = vpack.c.b16 %v1253, %v1251
        %v1274 = vpack.c.b16 %v1256, %v1254
        %v1275 = vpack.c.b16 %v1257, %v1255
        %v1276 = vpack.c.b16 %v1260, %v1258
        %v1277 = vpack.c.b16 %v1261, %v1259
        %1294 = vmatprep.subr.bf16.mxu0 %v1277
        %1295 = vmatpush1.bf16.msra.mxu0 %v1276
        %1296 = vmatprep.subr.bf16.mxu0 %v1275
        %1297 = vmatpush1.bf16.msra.mxu0 %v1274
        %1298 = vmatprep.subr.bf16.mxu0 %v1273
        %1299 = vmatpush1.bf16.msra.mxu0 %v1272
        %1300 = vmatprep.subr.bf16.mxu0 %v1271
        %1301 = vmatpush1.bf16.msra.mxu0 %v1270
        %1302 = vmatprep.subr.bf16.mxu0 %v1269
        %1303 = vmatpush1.bf16.msra.mxu0 %v1268
        %1304 = vmatprep.subr.bf16.mxu0 %v1267
        %1305 = vmatpush1.bf16.msra.mxu0 %v1266
        %1306 = vmatprep.subr.bf16.mxu0 %v1265
        %1307 = vmatpush1.bf16.msra.mxu0 %v1264
        %1308 = vmatprep.subr.bf16.mxu0 %v1263
        %1309 = vmatpush1.bf16.msra.mxu0 %v1262
        %1310 = vmatprep.subr.bf16.mxu0 0
        %1311 = vmatpush2.bf16.msra.mxu0 0
        %1312 = vmatprep.subr.bf16.mxu0 0
        %1313 = vmatpush2.bf16.msra.mxu0 0
        %1314 = vmatprep.subr.bf16.mxu0 0
        %1315 = vmatpush2.bf16.msra.mxu0 0
        %1316 = vmatprep.subr.bf16.mxu0 0
        %1317 = vmatpush2.bf16.msra.mxu0 0
        %1318 = vmatprep.subr.bf16.mxu0 0
        %1319 = vmatpush2.bf16.msra.mxu0 0
        %1320 = vmatprep.subr.bf16.mxu0 0
        %1321 = vmatpush2.bf16.msra.mxu0 0
        %1322 = vmatprep.subr.bf16.mxu0 0
        %1323 = vmatpush2.bf16.msra.mxu0 0
        %1324 = vmatprep.subr.bf16.mxu0 0
        %1325 = vmatpush2.bf16.msra.mxu0 0
        %1326 = vmatprep.mubr.bf16.mxu0 0
        %1327 = vmatmul.mubr.bf16.gmra.mxu0 %v1186
        %v1328 = vpop.f32.mrf.mxu0
        %v1329 = vadd.f32 %v1209, %v1328
        %v1330 = vpop.f32.mrf.mxu0
        %v1331 = vadd.f32 %v1213, %v1330
        %v1332 = vpop.f32.mrf.mxu0
        %v1333 = vadd.f32 %v1209, %v1332
        %v1334 = vpop.f32.mrf.mxu0
        %v1335 = vadd.f32 %v1213, %v1334
        %1336 = vmatprep.mubr.bf16.mxu0 0
        %1337 = vmatmul.mubr.bf16.gmra.mxu0 %v1187
        %v1338 = vpop.f32.mrf.mxu0
        %v1339 = vadd.f32 %v1209, %v1338
        %v1340 = vpop.f32.mrf.mxu0
        %v1341 = vadd.f32 %v1213, %v1340
        %v1342 = vpop.f32.mrf.mxu0
        %v1343 = vadd.f32 %v1209, %v1342
        %v1344 = vpop.f32.mrf.mxu0
        %v1345 = vadd.f32 %v1213, %v1344
        %1346 = vmatprep.mubr.bf16.mxu0 0
        %1347 = vmatmul.mubr.bf16.gmra.mxu0 %v1188
        %v1348 = vpop.f32.mrf.mxu0
        %v1349 = vadd.f32 %v1209, %v1348
        %v1350 = vpop.f32.mrf.mxu0
        %v1351 = vadd.f32 %v1213, %v1350
        %v1352 = vpop.f32.mrf.mxu0
        %v1353 = vadd.f32 %v1209, %v1352
        %v1354 = vpop.f32.mrf.mxu0
        %v1355 = vadd.f32 %v1213, %v1354
        %1356 = vmatprep.mubr.bf16.mxu0 0
        %1357 = vmatmul.mubr.bf16.gmra.mxu0 %v1189
        %v1358 = vpop.f32.mrf.mxu0
        %v1359 = vadd.f32 %v1209, %v1358
        %v1360 = vpop.f32.mrf.mxu0
        %v1361 = vadd.f32 %v1213, %v1360
        %v1362 = vpop.f32.mrf.mxu0
        %v1363 = vadd.f32 %v1209, %v1362
        %v1364 = vpop.f32.mrf.mxu0
        %v1365 = vadd.f32 %v1213, %v1364
        %1366 = vdwg.mxu0
        %1367 = vst [vmem:[%s333] sm:$0xff] %v1329
        %1368 = vst [vmem:[%s333 + $0x8] sm:$0xff] %v1331
        %1369 = vst [vmem:[%s333 + $0x10] sm:$0xff] %v1333
        %1370 = vst [vmem:[%s333 + $0x18] sm:$0xff] %v1335
        %1371 = vst [vmem:[%s333 + $0x20] sm:$0xff] %v1339
        %1372 = vst [vmem:[%s333 + $0x28] sm:$0xff] %v1341
        %1373 = vst [vmem:[%s333 + $0x30] sm:$0xff] %v1343
        %1374 = vst [vmem:[%s333 + $0x38] sm:$0xff] %v1345
        %1375 = vst [vmem:[%s333 + $0x40] sm:$0xff] %v1349
        %1376 = vst [vmem:[%s333 + $0x48] sm:$0xff] %v1351
        %1377 = vst [vmem:[%s333 + $0x50] sm:$0xff] %v1353
        %1378 = vst [vmem:[%s333 + $0x58] sm:$0xff] %v1355
        %1379 = vst [vmem:[%s333 + $0x60] sm:$0xff] %v1359
        %1380 = vst [vmem:[%s333 + $0x68] sm:$0xff] %v1361
        %1381 = vst [vmem:[%s333 + $0x70] sm:$0xff] %v1363
        %1382 = vst [vmem:[%s333 + $0x78] sm:$0xff] %v1365
        %s1383 = sand.u32 %s171, 1
        %s1384 = scalar_lea.sflag [#allocation4], %s1383
        %s1385 = sand.u32 %s171, 1
        %s1386 = smul.addr %s1385, 64
        %s1387 = scalar_lea.vmem [#allocation7], %s1386
        %s1388 = sand.u32 %s197, 1
        %s1389 = scalar_lea.sflag [#allocation9], %s1388
        %s1390 = sand.u32 %s197, 1
        %s1391 = smul.addr %s1390, 128
        %s1392 = scalar_lea.vmem [#allocation8], %s1391
        // Predicated region
        $region53: #{gcn_forward.1} parent=43 // pred_check
          %p1393 = pneg %p181
        $region54: #{gcn_forward.1} parent=43 // pred_check_branch
          %1395 = sbr.rel (%p1393) target = $region56
        $region55: #{gcn_forward.1} parent=43 // pred_region
          %s1396 = smul.u32 8, %s27
          %s1398 = ssub.s32 1024, 1024
          %1399 = vsyncadd %s1384, %s1398
          %s1400 = smul.addr %s1396, 128
          %s1401 = scalar_lea.hbm %s6, %s1400
          %s1402 = sshll.u32 %s1387, 4
          %s1403 = int_to_ptr.vmem [resolvable:$true] %s1402
          %1408 = dma.vmem_to_hbm [thread:$0]  %s1403, 1024, %s1401, %s1384, 128, 128, 8
        $region56: #{gcn_forward.1} parent=43 // pred_fallthru
          _
        // Predicated region
        $region57: #{gcn_forward.1} parent=43 // pred_check
          %p1409 = pneg %p207
        $region58: #{gcn_forward.1} parent=43 // pred_check_branch
          %1411 = sbr.rel (%p1409) target = $region60
        $region59: #{gcn_forward.1} parent=43 // pred_region
          %s1412 = smul.u32 8, %s27
          %s1414 = ssub.s32 2048, 2048
          %1415 = vsyncadd %s1389, %s1414
          %s1416 = smul.addr %s1412, 2
          %s1417 = smul.addr %s1416, 128
          %s1418 = scalar_lea.hbm %s7, %s1417
          %s1419 = sshll.u32 %s1392, 4
          %s1420 = int_to_ptr.vmem [resolvable:$true] %s1419
          %1425 = dma.vmem_to_hbm [thread:$0]  %s1420, 2048, %s1418, %s1389, 256, 256, 16
        $region60: #{gcn_forward.1} parent=43 // pred_fallthru
          _
      $region44: #{gcn_forward.1} parent=5 // pred_fallthru
        _
      %p1426 = scmp.le.s32.totalorder 2, %s22
      // Predicated region
      $region61: #{gcn_forward.1} parent=5 // pred_check
        %p1427 = pneg %p1426
      $region62: #{gcn_forward.1} parent=5 // pred_check_branch
        %1429 = sbr.rel (%p1427) target = $region64
      $region63: #{gcn_forward.1} parent=5 // pred_region
        %s1430 = ssub.s32 %s22, 2
        // Predicated region
        $region65: #{gcn_forward.1} parent=63 // pred_check
          %p1431 = pneg %p187
        $region66: #{gcn_forward.1} parent=63 // pred_check_branch
          %1433 = sbr.rel (%p1431) target = $region68
        $region67: #{gcn_forward.1} parent=63 // pred_region
          %s1434 = sand.u32 %s172, 1
          %s1435 = scalar_lea.sflag [#allocation4], %s1434
          %s1436 = sand.u32 %s172, 1
          %s1437 = smul.addr %s1436, 64
          %s1438 = scalar_lea.vmem [#allocation7], %s1437
          %1439 = dma.done %s1435, 1024
        $region68: #{gcn_forward.1} parent=63 // pred_fallthru
          _
        // Predicated region
        $region69: #{gcn_forward.1} parent=63 // pred_check
          %p1440 = pneg %p213
        $region70: #{gcn_forward.1} parent=63 // pred_check_branch
          %1442 = sbr.rel (%p1440) target = $region72
        $region71: #{gcn_forward.1} parent=63 // pred_region
          %s1443 = sand.u32 %s198, 1
          %s1444 = scalar_lea.sflag [#allocation9], %s1443
          %s1445 = sand.u32 %s198, 1
          %s1446 = smul.addr %s1445, 128
          %s1447 = scalar_lea.vmem [#allocation8], %s1446
          %1448 = dma.done %s1444, 2048
        $region72: #{gcn_forward.1} parent=63 // pred_fallthru
          _
      $region64: #{gcn_forward.1} parent=5 // pred_fallthru
        _
    $region6: #{gcn_forward.1} parent=1 // loop_footer
      %s26 = sadd.s32 1, %s22
    $region7: #{gcn_forward.1} parent=1 // loop_footer_branch
      %21 = sbr.rel target = $region3
    $region8: #{gcn_forward.1} parent=1 // loop_exit
      _
    %1449 = vsyncpa [#allocation3], 1
    %s1450 = scalar_lea.sflag [#allocation3], 1
    %1451 = vsyncpa %s1450, 1
    %1452 = vsyncpa [#allocation6], 1
    %1453 = vsyncpa [#allocation4], 1
    %s1454 = scalar_lea.sflag [#allocation4], 1
    %1455 = vsyncpa %s1454, 1
    %1456 = vsyncpa [#allocation9], 1
    %s1457 = scalar_lea.sflag [#allocation9], 1
    %1458 = vsyncpa %s1457, 1

</llo_original>
